<compile_context>
chip_gen: v7x
topology: tpu7x:2x2x1
jax: 0.10.0
libtpu: 0.0.40
codegen_flags: <defaults>
</compile_context>

<pallas_src>
import jax
import jax.numpy as jnp
from jax import lax
from jax.experimental import pallas as pl
from jax.experimental.pallas import tpu as pltpu


def _make_kernel(K, kt, P, B, C_out, T, V):
    C = C_out
    TV = T * V

    def kernel(x_ref, w1_ref, bvec1_ref, a_blk_ref, bb1_ref, wt_ref, bb2_ref,
               o_ref):
        # grid-invariant operands, loaded once per step
        w1 = w1_ref[...]            # ((K+1)*C, C_in)  bf16
        bvec1 = bvec1_ref[...]      # ((K+1)*C, 1)     f32
        bb1 = bb1_ref[...]          # (C, 1)           f32
        wt = wt_ref[...]            # (kt*C, C)        bf16
        bb2 = bb2_ref[...]          # (C, 1)           f32
        lane = lax.broadcasted_iota(jnp.int32, (1, TV), 1)

        for b in range(B):                      # static, small (B==1 for toy N=2)
            x = x_ref[b]                        # (C_in, TV) bf16, lane-dense

            # fused gcn + residual 1x1 convs (BN scales folded into w1/bvec1)
            y_all = jnp.dot(w1, x, preferred_element_type=jnp.float32) + bvec1
            r = y_all[K * C:, :]                # residual branch (BN folded), f32

            # graph contraction: z = sum_k y_k @ kron(I_T, A_k); init from k=0
            # with the BN1 bias folded into the start of the accumulation.
            z = jnp.dot(y_all[0:C, :].astype(jnp.bfloat16), a_blk_ref[0],
                        preferred_element_type=jnp.float32) + bb1
            for k in range(1, K):               # K static & small
                z = z + jnp.dot(y_all[k * C:(k + 1) * C, :].astype(jnp.bfloat16),
                                a_blk_ref[k],
                                preferred_element_type=jnp.float32)

            # BN1 (scale folded into w1, bias in bb1) + ReLU, then cast for MXU
            z = jnp.maximum(z, 0.0).astype(jnp.bfloat16)

            # temporal (kt,1) conv: one stacked channel-mix dot, then
            # zero-padded temporal shifts as lane rolls (XLU) + edge masks.
            pstk = jnp.dot(wt, z, preferred_element_type=jnp.float32)  # (kt*C, TV)

            out = bb2 + r + pstk[P * C:(P + 1) * C, :]   # center tap, no shift
            for dt in range(kt):                          # kt static & small
                if dt == P:
                    continue
                m = (P - dt) * V                          # lane shift (signed)
                rolled = pltpu.roll(pstk[dt * C:(dt + 1) * C, :],
                                    shift=m % TV, axis=1)
                # roll is circular: zero out lanes that wrapped across the
                # temporal zero-padding boundary.
                mask = (lane >= m) if m > 0 else (lane < TV + m)
                out = out + jnp.where(mask, rolled, 0.0)

            o_ref[b] = jnp.maximum(out, 0.0)              # full-128-lane store

    return kernel


def _pick_batch_block(N):
    """Largest B dividing N that still leaves >= 2 grid steps (if possible)."""
    for cand in range(min(N, 8), 0, -1):
        if N % cand == 0 and (N // cand >= 2 or N == 1):
            return cand
    return 1


def st_gcn_forward(x, A, p):
    N, C_in, T, V = x.shape
    K = A.shape[0]
    kt, C_out, _ = p["w_tcn"].shape
    assert kt % 2 == 1, "temporal kernel must be odd (matches PyTorch assert)"
    P = (kt - 1) // 2
    TV = T * V
    f32, bf16 = jnp.float32, jnp.bfloat16

    B = _pick_batch_block(N)

    # ---- fold eval-mode BatchNorms into adjacent weights / biases ----
    s1 = p["s1"].reshape(C_out); b1 = p["b1"].reshape(C_out)
    s2 = p["s2"].reshape(C_out); b2 = p["b2"].reshape(C_out)
    sr = p["s_res"].reshape(C_out); br = p["bn_res"].reshape(C_out)

    w_gcn = p["w_gcn"].reshape(K, C_out, C_in) * s1[None, :, None]
    b_gcn = (p["b_gcn"].reshape(K, C_out) * s1[None, :]).reshape(K * C_out, 1)
    w_res = p["w_res"] * sr[:, None]
    b_res = (p["b_res"].reshape(C_out) * sr + br).reshape(C_out, 1)

    # stage-1 fused weight: gcn (K*C_out rows) + residual (C_out rows)
    w1 = jnp.concatenate([w_gcn.reshape(K * C_out, C_in), w_res], axis=0)
    bvec1 = jnp.concatenate([b_gcn, b_res], axis=0)

    # graph contraction blocks kron(I_T, A_k), and BN1 bias
    a_blk = jnp.einsum("pq,kab->kpaqb", jnp.eye(T, dtype=f32),
                       A.astype(f32)).reshape(K, TV, TV)
    bb1 = b1.reshape(C_out, 1)

    # temporal conv weights (BN2 scale folded) + bias
    wt = (p["w_tcn"] * s2[None, :, None]).reshape(kt * C_out, C_out)
    bb2 = (p["b_tcn"].reshape(C_out) * s2 + b2).reshape(C_out, 1)

    # ---- bf16 MXU operands; biases / accumulation stay f32 ----
    x3 = x.reshape(N, C_in, TV).astype(bf16)
    w1_b = w1.astype(bf16)
    a_blk_b = a_blk.astype(bf16)
    wt_b = wt.astype(bf16)

    kernel = _make_kernel(K, kt, P, B, C_out, T, V)

    def build(single_buffer_consts):
        def const_spec(shape):
            nd = len(shape)
            idx = lambda g, _nd=nd: (0,) * _nd
            if single_buffer_consts:
                # grid-invariant: no need to double-buffer these DMAs
                return pl.BlockSpec(shape, idx, pipeline_mode=pl.Buffered(1))
            return pl.BlockSpec(shape, idx)

        return pl.pallas_call(
            kernel,
            out_shape=jax.ShapeDtypeStruct((N, C_out, TV), f32),
            grid_spec=pltpu.PrefetchScalarGridSpec(
                num_scalar_prefetch=0,
                grid=(N // B,),
                in_specs=[
                    pl.BlockSpec((B, C_in, TV), lambda g: (g, 0, 0)),  # x
                    const_spec(w1_b.shape), const_spec(bvec1.shape),
                    const_spec(a_blk_b.shape), const_spec(bb1.shape),
                    const_spec(wt_b.shape), const_spec(bb2.shape),
                ],
                out_specs=pl.BlockSpec((B, C_out, TV), lambda g: (g, 0, 0)),
            ),
            compiler_params=pltpu.CompilerParams(
                dimension_semantics=("parallel",),
                vmem_limit_bytes=32 * 1024 * 1024),
        )

    args = (x3, w1_b, bvec1, a_blk_b, bb1, wt_b, bb2)
    try:
        out = jax.block_until_ready(build(True)(*args))
    except Exception:
        # TODO(synk): pipeline_mode=pl.Buffered(1) not supported by this jax
        # version; fall back to default double-buffered constant operands.
        out = jax.block_until_ready(build(False)(*args))

    return out.reshape(N, C_out, T, V), A


def reference(x, A, p):
    """Pure-JAX f32 reference mirroring the PyTorch forward (eval-mode BN)."""
    N, C_in, T, V = x.shape
    K = A.shape[0]
    kt, C_out, _ = p["w_tcn"].shape
    P = (kt - 1) // 2
    xf = x.reshape(N, C_in, T * V)

    r = jnp.einsum("oc,nct->not", p["w_res"], xf) + p["b_res"][None]
    r = r * p["s_res"][None] + p["bn_res"][None]

    y = jnp.einsum("oc,nct->not", p["w_gcn"], xf) + p["b_gcn"][None]
    y = y.reshape(N, K, C_out, T, V)
    z = jnp.einsum("nkctv,kvw->nctw", y, A)

    z = z * p["s1"].reshape(1, C_out, 1, 1) + p["b1"].reshape(1, C_out, 1, 1)
    z = jnp.maximum(z, 0.0)
    zp = jnp.pad(z, ((0, 0), (0, 0), (P, P), (0, 0)))
    out = jnp.zeros((N, C_out, T, V)) + p["b_tcn"].reshape(1, C_out, 1, 1)
    for dt in range(kt):
        out = out + jnp.einsum("oc,nctv->notv", p["w_tcn"][dt], zp[:, :, dt:dt + T, :])
    out = out * p["s2"].reshape(1, C_out, 1, 1) + p["b2"].reshape(1, C_out, 1, 1)
    out = jnp.maximum(out + r.reshape(N, C_out, T, V), 0.0)
    return out, A


def make_params(key, C_in, C_out, K, kt):
    ks = jax.random.split(key, 16)
    eps = 1e-5

    def bn_fold(kg, kb, km, kv, C):
        gamma = 1.0 + 0.1 * jax.random.normal(kg, (C,), jnp.float32)
        beta = 0.1 * jax.random.normal(kb, (C,), jnp.float32)
        mean = 0.1 * jax.random.normal(km, (C,), jnp.float32)
        var = jnp.abs(jax.random.normal(kv, (C,), jnp.float32)) + 0.5
        scale = gamma / jnp.sqrt(var + eps)
        bias = beta - mean * scale
        return scale.reshape(C, 1), bias.reshape(C, 1)

    p = {}
    p["w_gcn"] = 0.2 * jax.random.normal(ks[0], (K * C_out, C_in), jnp.float32)
    p["b_gcn"] = 0.1 * jax.random.normal(ks[1], (K * C_out, 1), jnp.float32)
    p["s1"], p["b1"] = bn_fold(ks[2], ks[3], ks[4], ks[5], C_out)
    p["w_tcn"] = 0.2 * jax.random.normal(ks[6], (kt, C_out, C_out), jnp.float32)
    p["b_tcn"] = 0.1 * jax.random.normal(ks[7], (C_out, 1), jnp.float32)
    p["s2"], p["b2"] = bn_fold(ks[8], ks[9], ks[10], ks[11], C_out)
    p["w_res"] = 0.2 * jax.random.normal(ks[12], (C_out, C_in), jnp.float32)
    p["b_res"] = 0.1 * jax.random.normal(ks[13], (C_out, 1), jnp.float32)
    p["s_res"], p["bn_res"] = bn_fold(ks[14], ks[15], ks[14], ks[15], C_out)
    return p


if __name__ == "__main__":
    # st_gcn block: N=2, C_in=4, C_out=8, T=8, V=16, kernel_size=(3,3)
    # -> temporal kt=3, spatial K=3, stride=1, dropout=0, residual conv path.
    N, C_in, C_out, T, V = 2, 4, 8, 8, 16
    kt, K = 3, 3

    key = jax.random.PRNGKey(0)
    kx, ka, kp = jax.random.split(key, 3)
    x = jax.random.normal(kx, (N, C_in, T, V), jnp.float32)
    A = jax.random.uniform(ka, (K, V, V), jnp.float32)
    params = make_params(kp, C_in, C_out, K, kt)

    out, A_out = st_gcn_forward(x, A, params)
    out = jax.block_until_ready(out)

    ref_out, _ = reference(x, A, params)
    assert out.shape == (N, C_out, T, V)
    # bf16 MXU operands with f32 accumulation -> looser tolerance than pure f32
    assert jnp.allclose(out, ref_out, atol=5e-2, rtol=5e-2), "mismatch vs reference"
    assert jnp.array_equal(A_out, A)
    print("KERNEL_OK")
</pallas_src>

<mosaic_0001>
module attributes {stable_mosaic.version = 11 : i64} {
  func.func @kernel(%arg0: i32, %arg1: memref<1x4x128xbf16, #tpu.memory_space<vmem>>, %arg2: memref<32x4xbf16, #tpu.memory_space<vmem>>, %arg3: memref<32x1xf32, #tpu.memory_space<vmem>>, %arg4: memref<3x128x128xbf16, #tpu.memory_space<vmem>>, %arg5: memref<8x1xf32, #tpu.memory_space<vmem>>, %arg6: memref<24x8xbf16, #tpu.memory_space<vmem>>, %arg7: memref<8x1xf32, #tpu.memory_space<vmem>>, %arg8: memref<1x8x128xf32, #tpu.memory_space<vmem>>) attributes {dimension_semantics = [#tpu.dimension_semantics<parallel>], iteration_bounds = array<i64: 2>, scalar_prefetch = 0 : i64, scratch_operands = 0 : i64, tpu.core_type = #tpu.core_type<tc>, window_params = [{transform_indices = @transform_0, window_bounds = array<i64: 1, 4, 128>}, {pipeline_mode = #tpu.pipeline_mode<synchronous>, transform_indices = @transform_1, window_bounds = array<i64: 32, 4>}, {pipeline_mode = #tpu.pipeline_mode<synchronous>, transform_indices = @transform_2, window_bounds = array<i64: 32, 1>}, {pipeline_mode = #tpu.pipeline_mode<synchronous>, transform_indices = @transform_3, window_bounds = array<i64: 3, 128, 128>}, {pipeline_mode = #tpu.pipeline_mode<synchronous>, transform_indices = @transform_4, window_bounds = array<i64: 8, 1>}, {pipeline_mode = #tpu.pipeline_mode<synchronous>, transform_indices = @transform_5, window_bounds = array<i64: 24, 8>}, {pipeline_mode = #tpu.pipeline_mode<synchronous>, transform_indices = @transform_6, window_bounds = array<i64: 8, 1>}, {transform_indices = @transform_7, window_bounds = array<i64: 1, 8, 128>}]} {
    %c0 = arith.constant 0 : index
    %c0_0 = arith.constant 0 : index
    %0 = vector.load %arg2[%c0, %c0_0] : memref<32x4xbf16, #tpu.memory_space<vmem>>, vector<32x4xbf16>
    %c0_1 = arith.constant 0 : index
    %c0_2 = arith.constant 0 : index
    %1 = vector.load %arg3[%c0_1, %c0_2] : memref<32x1xf32, #tpu.memory_space<vmem>>, vector<32x1xf32>
    %c0_3 = arith.constant 0 : index
    %c0_4 = arith.constant 0 : index
    %2 = vector.load %arg5[%c0_3, %c0_4] : memref<8x1xf32, #tpu.memory_space<vmem>>, vector<8x1xf32>
    %c0_5 = arith.constant 0 : index
    %c0_6 = arith.constant 0 : index
    %3 = vector.load %arg6[%c0_5, %c0_6] : memref<24x8xbf16, #tpu.memory_space<vmem>>, vector<24x8xbf16>
    %c0_7 = arith.constant 0 : index
    %c0_8 = arith.constant 0 : index
    %4 = vector.load %arg7[%c0_7, %c0_8] : memref<8x1xf32, #tpu.memory_space<vmem>>, vector<8x1xf32>
    %5 = tpu.iota {dimensions = array<i32: 1>} : vector<1x128xi32>
    %c0_9 = arith.constant 0 : index
    %c0_10 = arith.constant 0 : index
    %c0_11 = arith.constant 0 : index
    %6 = vector.load %arg1[%c0_9, %c0_10, %c0_11] : memref<1x4x128xbf16, #tpu.memory_space<vmem>>, vector<1x4x128xbf16>
    %7 = vector.shape_cast %6 : vector<1x4x128xbf16> to vector<4x128xbf16>
    %cst = arith.constant dense<0.000000e+00> : vector<32x128xf32>
    %8 = tpu.matmul %0, %7, %cst {dimension_numbers = #tpu.dot_dimension_numbers<[1], [0], [0], [1], [0, 0, 1, 1], [], []>} : vector<32x4xbf16>, vector<4x128xbf16>, vector<32x128xf32> -> vector<32x128xf32>
    %9 = vector.broadcast %1 : vector<32x1xf32> to vector<32x128xf32>
    %10 = arith.addf %8, %9 : vector<32x128xf32>
    %11 = vector.extract_strided_slice %10 {offsets = [24, 0], sizes = [8, 128], strides = [1, 1]} : vector<32x128xf32> to vector<8x128xf32>
    %12 = vector.extract_strided_slice %10 {offsets = [0, 0], sizes = [8, 128], strides = [1, 1]} : vector<32x128xf32> to vector<8x128xf32>
    %13 = arith.truncf %12 : vector<8x128xf32> to vector<8x128xbf16>
    %c0_12 = arith.constant 0 : index
    %c0_13 = arith.constant 0 : index
    %c0_14 = arith.constant 0 : index
    %14 = vector.load %arg4[%c0_12, %c0_13, %c0_14] : memref<3x128x128xbf16, #tpu.memory_space<vmem>>, vector<1x128x128xbf16>
    %15 = vector.shape_cast %14 : vector<1x128x128xbf16> to vector<128x128xbf16>
    %cst_15 = arith.constant dense<0.000000e+00> : vector<8x128xf32>
    %16 = tpu.matmul %13, %15, %cst_15 {dimension_numbers = #tpu.dot_dimension_numbers<[1], [0], [0], [1], [0, 0, 1, 1], [], []>} : vector<8x128xbf16>, vector<128x128xbf16>, vector<8x128xf32> -> vector<8x128xf32>
    %17 = vector.broadcast %2 : vector<8x1xf32> to vector<8x128xf32>
    %18 = arith.addf %16, %17 : vector<8x128xf32>
    %19 = vector.extract_strided_slice %10 {offsets = [8, 0], sizes = [8, 128], strides = [1, 1]} : vector<32x128xf32> to vector<8x128xf32>
    %20 = arith.truncf %19 : vector<8x128xf32> to vector<8x128xbf16>
    %c1 = arith.constant 1 : index
    %c0_16 = arith.constant 0 : index
    %c0_17 = arith.constant 0 : index
    %21 = vector.load %arg4[%c1, %c0_16, %c0_17] : memref<3x128x128xbf16, #tpu.memory_space<vmem>>, vector<1x128x128xbf16>
    %22 = vector.shape_cast %21 : vector<1x128x128xbf16> to vector<128x128xbf16>
    %cst_18 = arith.constant dense<0.000000e+00> : vector<8x128xf32>
    %23 = tpu.matmul %20, %22, %cst_18 {dimension_numbers = #tpu.dot_dimension_numbers<[1], [0], [0], [1], [0, 0, 1, 1], [], []>} : vector<8x128xbf16>, vector<128x128xbf16>, vector<8x128xf32> -> vector<8x128xf32>
    %24 = arith.addf %18, %23 : vector<8x128xf32>
    %25 = vector.extract_strided_slice %10 {offsets = [16, 0], sizes = [8, 128], strides = [1, 1]} : vector<32x128xf32> to vector<8x128xf32>
    %26 = arith.truncf %25 : vector<8x128xf32> to vector<8x128xbf16>
    %c2 = arith.constant 2 : index
    %c0_19 = arith.constant 0 : index
    %c0_20 = arith.constant 0 : index
    %27 = vector.load %arg4[%c2, %c0_19, %c0_20] : memref<3x128x128xbf16, #tpu.memory_space<vmem>>, vector<1x128x128xbf16>
    %28 = vector.shape_cast %27 : vector<1x128x128xbf16> to vector<128x128xbf16>
    %cst_21 = arith.constant dense<0.000000e+00> : vector<8x128xf32>
    %29 = tpu.matmul %26, %28, %cst_21 {dimension_numbers = #tpu.dot_dimension_numbers<[1], [0], [0], [1], [0, 0, 1, 1], [], []>} : vector<8x128xbf16>, vector<128x128xbf16>, vector<8x128xf32> -> vector<8x128xf32>
    %30 = arith.addf %24, %29 : vector<8x128xf32>
    %cst_22 = arith.constant 0.000000e+00 : f32
    %31 = vector.broadcast %cst_22 : f32 to vector<8x128xf32>
    %32 = arith.maximumf %30, %31 : vector<8x128xf32>
    %33 = arith.truncf %32 : vector<8x128xf32> to vector<8x128xbf16>
    %cst_23 = arith.constant dense<0.000000e+00> : vector<24x128xf32>
    %34 = tpu.matmul %3, %33, %cst_23 {dimension_numbers = #tpu.dot_dimension_numbers<[1], [0], [0], [1], [0, 0, 1, 1], [], []>} : vector<24x8xbf16>, vector<8x128xbf16>, vector<24x128xf32> -> vector<24x128xf32>
    %35 = vector.broadcast %4 : vector<8x1xf32> to vector<8x128xf32>
    %36 = arith.addf %35, %11 : vector<8x128xf32>
    %37 = vector.extract_strided_slice %34 {offsets = [8, 0], sizes = [8, 128], strides = [1, 1]} : vector<24x128xf32> to vector<8x128xf32>
    %38 = arith.addf %36, %37 : vector<8x128xf32>
    %39 = vector.extract_strided_slice %34 {offsets = [0, 0], sizes = [8, 128], strides = [1, 1]} : vector<24x128xf32> to vector<8x128xf32>
    %c16_i32 = arith.constant 16 : i32
    %40 = tpu.dynamic_rotate %39 by %c16_i32 dim 1 : vector<8x128xf32>, i32 -> vector<8x128xf32>
    %c16_i32_24 = arith.constant 16 : i32
    %41 = vector.broadcast %c16_i32_24 : i32 to vector<1x128xi32>
    %42 = arith.cmpi sge, %5, %41 : vector<1x128xi32>
    %cst_25 = arith.constant 0.000000e+00 : f32
    %43 = vector.shape_cast %42 : vector<1x128xi1> to vector<1x128xi1>
    %44 = vector.broadcast %43 : vector<1x128xi1> to vector<8x128xi1>
    %45 = vector.broadcast %cst_25 : f32 to vector<8x128xf32>
    %46 = arith.select %44, %40, %45 : vector<8x128xi1>, vector<8x128xf32>
    %47 = arith.addf %38, %46 : vector<8x128xf32>
    %48 = vector.extract_strided_slice %34 {offsets = [16, 0], sizes = [8, 128], strides = [1, 1]} : vector<24x128xf32> to vector<8x128xf32>
    %c112_i32 = arith.constant 112 : i32
    %49 = tpu.dynamic_rotate %48 by %c112_i32 dim 1 : vector<8x128xf32>, i32 -> vector<8x128xf32>
    %c112_i32_26 = arith.constant 112 : i32
    %50 = vector.broadcast %c112_i32_26 : i32 to vector<1x128xi32>
    %51 = arith.cmpi slt, %5, %50 : vector<1x128xi32>
    %cst_27 = arith.constant 0.000000e+00 : f32
    %52 = vector.shape_cast %51 : vector<1x128xi1> to vector<1x128xi1>
    %53 = vector.broadcast %52 : vector<1x128xi1> to vector<8x128xi1>
    %54 = vector.broadcast %cst_27 : f32 to vector<8x128xf32>
    %55 = arith.select %53, %49, %54 : vector<8x128xi1>, vector<8x128xf32>
    %56 = arith.addf %47, %55 : vector<8x128xf32>
    %cst_28 = arith.constant 0.000000e+00 : f32
    %57 = vector.broadcast %cst_28 : f32 to vector<8x128xf32>
    %58 = arith.maximumf %56, %57 : vector<8x128xf32>
    %c0_29 = arith.constant 0 : index
    %c0_30 = arith.constant 0 : index
    %c0_31 = arith.constant 0 : index
    %59 = vector.load %arg8[%c0_29, %c0_30, %c0_31] : memref<1x8x128xf32, #tpu.memory_space<vmem>>, vector<1x8x128xf32>
    %60 = vector.shape_cast %59 : vector<1x8x128xf32> to vector<8x128xf32>
    %61 = vector.shape_cast %58 : vector<8x128xf32> to vector<1x8x128xf32>
    tpu.vector_store %arg8[%c0_29, %c0_30, %c0_31], %61 {strides = array<i32>} : memref<1x8x128xf32, #tpu.memory_space<vmem>>, vector<1x8x128xf32>,
    return
  }
  func.func @transform_0(%arg0: i32) -> (i32, i32, i32) {
    %c0_i32 = arith.constant 0 : i32
    %c0_i32_0 = arith.constant 0 : i32
    %c0_i32_1 = arith.constant 0 : i32
    return %arg0, %c0_i32, %c0_i32_0 : i32, i32, i32
  }
  func.func @transform_1(%arg0: i32) -> (i32, i32) {
    %c0_i32 = arith.constant 0 : i32
    %c0_i32_0 = arith.constant 0 : i32
    %c0_i32_1 = arith.constant 0 : i32
    return %c0_i32, %c0_i32_0 : i32, i32
  }
  func.func @transform_2(%arg0: i32) -> (i32, i32) {
    %c0_i32 = arith.constant 0 : i32
    %c0_i32_0 = arith.constant 0 : i32
    %c0_i32_1 = arith.constant 0 : i32
    return %c0_i32, %c0_i32_0 : i32, i32
  }
  func.func @transform_3(%arg0: i32) -> (i32, i32, i32) {
    %c0_i32 = arith.constant 0 : i32
    %c0_i32_0 = arith.constant 0 : i32
    %c0_i32_1 = arith.constant 0 : i32
    %c0_i32_2 = arith.constant 0 : i32
    return %c0_i32, %c0_i32_0, %c0_i32_1 : i32, i32, i32
  }
  func.func @transform_4(%arg0: i32) -> (i32, i32) {
    %c0_i32 = arith.constant 0 : i32
    %c0_i32_0 = arith.constant 0 : i32
    %c0_i32_1 = arith.constant 0 : i32
    return %c0_i32, %c0_i32_0 : i32, i32
  }
  func.func @transform_5(%arg0: i32) -> (i32, i32) {
    %c0_i32 = arith.constant 0 : i32
    %c0_i32_0 = arith.constant 0 : i32
    %c0_i32_1 = arith.constant 0 : i32
    return %c0_i32, %c0_i32_0 : i32, i32
  }
  func.func @transform_6(%arg0: i32) -> (i32, i32) {
    %c0_i32 = arith.constant 0 : i32
    %c0_i32_0 = arith.constant 0 : i32
    %c0_i32_1 = arith.constant 0 : i32
    return %c0_i32, %c0_i32_0 : i32, i32
  }
  func.func @transform_7(%arg0: i32) -> (i32, i32, i32) {
    %c0_i32 = arith.constant 0 : i32
    %c0_i32_0 = arith.constant 0 : i32
    %c0_i32_1 = arith.constant 0 : i32
    return %arg0, %c0_i32, %c0_i32_0 : i32, i32, i32
  }
}

module attributes {stable_mosaic.version = 11 : i64} {
  func.func @kernel(%arg0: i32, %arg1: memref<1x4x128xbf16, #tpu.memory_space<vmem>>, %arg2: memref<32x4xbf16, #tpu.memory_space<vmem>>, %arg3: memref<32x1xf32, #tpu.memory_space<vmem>>, %arg4: memref<3x128x128xbf16, #tpu.memory_space<vmem>>, %arg5: memref<8x1xf32, #tpu.memory_space<vmem>>, %arg6: memref<24x8xbf16, #tpu.memory_space<vmem>>, %arg7: memref<8x1xf32, #tpu.memory_space<vmem>>, %arg8: memref<1x8x128xf32, #tpu.memory_space<vmem>>) attributes {dimension_semantics = [#tpu.dimension_semantics<parallel>], iteration_bounds = array<i64: 2>, scalar_prefetch = 0 : i64, scratch_operands = 0 : i64, tpu.core_type = #tpu.core_type<tc>, window_params = [{transform_indices = @transform_0, window_bounds = array<i64: 1, 4, 128>}, {pipeline_mode = #tpu.pipeline_mode<synchronous>, transform_indices = @transform_1, window_bounds = array<i64: 32, 4>}, {pipeline_mode = #tpu.pipeline_mode<synchronous>, transform_indices = @transform_2, window_bounds = array<i64: 32, 1>}, {pipeline_mode = #tpu.pipeline_mode<synchronous>, transform_indices = @transform_3, window_bounds = array<i64: 3, 128, 128>}, {pipeline_mode = #tpu.pipeline_mode<synchronous>, transform_indices = @transform_4, window_bounds = array<i64: 8, 1>}, {pipeline_mode = #tpu.pipeline_mode<synchronous>, transform_indices = @transform_5, window_bounds = array<i64: 24, 8>}, {pipeline_mode = #tpu.pipeline_mode<synchronous>, transform_indices = @transform_6, window_bounds = array<i64: 8, 1>}, {transform_indices = @transform_7, window_bounds = array<i64: 1, 8, 128>}]} {
    %c0 = arith.constant 0 : index
    %c0_0 = arith.constant 0 : index
    %0 = vector.load %arg2[%c0, %c0_0] : memref<32x4xbf16, #tpu.memory_space<vmem>>, vector<32x4xbf16>
    %c0_1 = arith.constant 0 : index
    %c0_2 = arith.constant 0 : index
    %1 = vector.load %arg3[%c0_1, %c0_2] : memref<32x1xf32, #tpu.memory_space<vmem>>, vector<32x1xf32>
    %c0_3 = arith.constant 0 : index
    %c0_4 = arith.constant 0 : index
    %2 = vector.load %arg5[%c0_3, %c0_4] : memref<8x1xf32, #tpu.memory_space<vmem>>, vector<8x1xf32>
    %c0_5 = arith.constant 0 : index
    %c0_6 = arith.constant 0 : index
    %3 = vector.load %arg6[%c0_5, %c0_6] : memref<24x8xbf16, #tpu.memory_space<vmem>>, vector<24x8xbf16>
    %c0_7 = arith.constant 0 : index
    %c0_8 = arith.constant 0 : index
    %4 = vector.load %arg7[%c0_7, %c0_8] : memref<8x1xf32, #tpu.memory_space<vmem>>, vector<8x1xf32>
    %5 = tpu.iota {dimensions = array<i32: 1>} : vector<1x128xi32>
    %c0_9 = arith.constant 0 : index
    %c0_10 = arith.constant 0 : index
    %c0_11 = arith.constant 0 : index
    %6 = vector.load %arg1[%c0_9, %c0_10, %c0_11] : memref<1x4x128xbf16, #tpu.memory_space<vmem>>, vector<1x4x128xbf16>
    %7 = vector.shape_cast %6 : vector<1x4x128xbf16> to vector<4x128xbf16>
    %cst = arith.constant dense<0.000000e+00> : vector<32x128xf32>
    %8 = tpu.matmul %0, %7, %cst {dimension_numbers = #tpu.dot_dimension_numbers<[1], [0], [0], [1], [0, 0, 1, 1], [], []>} : vector<32x4xbf16>, vector<4x128xbf16>, vector<32x128xf32> -> vector<32x128xf32>
    %9 = vector.broadcast %1 : vector<32x1xf32> to vector<32x128xf32>
    %10 = arith.addf %8, %9 : vector<32x128xf32>
    %11 = vector.extract_strided_slice %10 {offsets = [24, 0], sizes = [8, 128], strides = [1, 1]} : vector<32x128xf32> to vector<8x128xf32>
    %12 = vector.extract_strided_slice %10 {offsets = [0, 0], sizes = [8, 128], strides = [1, 1]} : vector<32x128xf32> to vector<8x128xf32>
    %13 = arith.truncf %12 : vector<8x128xf32> to vector<8x128xbf16>
    %c0_12 = arith.constant 0 : index
    %c0_13 = arith.constant 0 : index
    %c0_14 = arith.constant 0 : index
    %14 = vector.load %arg4[%c0_12, %c0_13, %c0_14] : memref<3x128x128xbf16, #tpu.memory_space<vmem>>, vector<1x128x128xbf16>
    %15 = vector.shape_cast %14 : vector<1x128x128xbf16> to vector<128x128xbf16>
    %cst_15 = arith.constant dense<0.000000e+00> : vector<8x128xf32>
    %16 = tpu.matmul %13, %15, %cst_15 {dimension_numbers = #tpu.dot_dimension_numbers<[1], [0], [0], [1], [0, 0, 1, 1], [], []>} : vector<8x128xbf16>, vector<128x128xbf16>, vector<8x128xf32> -> vector<8x128xf32>
    %17 = vector.broadcast %2 : vector<8x1xf32> to vector<8x128xf32>
    %18 = arith.addf %16, %17 : vector<8x128xf32>
    %19 = vector.extract_strided_slice %10 {offsets = [8, 0], sizes = [8, 128], strides = [1, 1]} : vector<32x128xf32> to vector<8x128xf32>
    %20 = arith.truncf %19 : vector<8x128xf32> to vector<8x128xbf16>
    %c1 = arith.constant 1 : index
    %c0_16 = arith.constant 0 : index
    %c0_17 = arith.constant 0 : index
    %21 = vector.load %arg4[%c1, %c0_16, %c0_17] : memref<3x128x128xbf16, #tpu.memory_space<vmem>>, vector<1x128x128xbf16>
    %22 = vector.shape_cast %21 : vector<1x128x128xbf16> to vector<128x128xbf16>
    %cst_18 = arith.constant dense<0.000000e+00> : vector<8x128xf32>
    %23 = tpu.matmul %20, %22, %cst_18 {dimension_numbers = #tpu.dot_dimension_numbers<[1], [0], [0], [1], [0, 0, 1, 1], [], []>} : vector<8x128xbf16>, vector<128x128xbf16>, vector<8x128xf32> -> vector<8x128xf32>
    %24 = arith.addf %18, %23 : vector<8x128xf32>
    %25 = vector.extract_strided_slice %10 {offsets = [16, 0], sizes = [8, 128], strides = [1, 1]} : vector<32x128xf32> to vector<8x128xf32>
    %26 = arith.truncf %25 : vector<8x128xf32> to vector<8x128xbf16>
    %c2 = arith.constant 2 : index
    %c0_19 = arith.constant 0 : index
    %c0_20 = arith.constant 0 : index
    %27 = vector.load %arg4[%c2, %c0_19, %c0_20] : memref<3x128x128xbf16, #tpu.memory_space<vmem>>, vector<1x128x128xbf16>
    %28 = vector.shape_cast %27 : vector<1x128x128xbf16> to vector<128x128xbf16>
    %cst_21 = arith.constant dense<0.000000e+00> : vector<8x128xf32>
    %29 = tpu.matmul %26, %28, %cst_21 {dimension_numbers = #tpu.dot_dimension_numbers<[1], [0], [0], [1], [0, 0, 1, 1], [], []>} : vector<8x128xbf16>, vector<128x128xbf16>, vector<8x128xf32> -> vector<8x128xf32>
    %30 = arith.addf %24, %29 : vector<8x128xf32>
    %cst_22 = arith.constant 0.000000e+00 : f32
    %31 = vector.broadcast %cst_22 : f32 to vector<8x128xf32>
    %32 = arith.maximumf %30, %31 : vector<8x128xf32>
    %33 = arith.truncf %32 : vector<8x128xf32> to vector<8x128xbf16>
    %cst_23 = arith.constant dense<0.000000e+00> : vector<24x128xf32>
    %34 = tpu.matmul %3, %33, %cst_23 {dimension_numbers = #tpu.dot_dimension_numbers<[1], [0], [0], [1], [0, 0, 1, 1], [], []>} : vector<24x8xbf16>, vector<8x128xbf16>, vector<24x128xf32> -> vector<24x128xf32>
    %35 = vector.broadcast %4 : vector<8x1xf32> to vector<8x128xf32>
    %36 = arith.addf %35, %11 : vector<8x128xf32>
    %37 = vector.extract_strided_slice %34 {offsets = [8, 0], sizes = [8, 128], strides = [1, 1]} : vector<24x128xf32> to vector<8x128xf32>
    %38 = arith.addf %36, %37 : vector<8x128xf32>
    %39 = vector.extract_strided_slice %34 {offsets = [0, 0], sizes = [8, 128], strides = [1, 1]} : vector<24x128xf32> to vector<8x128xf32>
    %c16_i32 = arith.constant 16 : i32
    %40 = tpu.dynamic_rotate %39 by %c16_i32 dim 1 : vector<8x128xf32>, i32 -> vector<8x128xf32>
    %c16_i32_24 = arith.constant 16 : i32
    %41 = vector.broadcast %c16_i32_24 : i32 to vector<1x128xi32>
    %42 = arith.cmpi sge, %5, %41 : vector<1x128xi32>
    %cst_25 = arith.constant 0.000000e+00 : f32
    %43 = vector.shape_cast %42 : vector<1x128xi1> to vector<1x128xi1>
    %44 = vector.broadcast %43 : vector<1x128xi1> to vector<8x128xi1>
    %45 = vector.broadcast %cst_25 : f32 to vector<8x128xf32>
    %46 = arith.select %44, %40, %45 : vector<8x128xi1>, vector<8x128xf32>
    %47 = arith.addf %38, %46 : vector<8x128xf32>
    %48 = vector.extract_strided_slice %34 {offsets = [16, 0], sizes = [8, 128], strides = [1, 1]} : vector<24x128xf32> to vector<8x128xf32>
    %c112_i32 = arith.constant 112 : i32
    %49 = tpu.dynamic_rotate %48 by %c112_i32 dim 1 : vector<8x128xf32>, i32 -> vector<8x128xf32>
    %c112_i32_26 = arith.constant 112 : i32
    %50 = vector.broadcast %c112_i32_26 : i32 to vector<1x128xi32>
    %51 = arith.cmpi slt, %5, %50 : vector<1x128xi32>
    %cst_27 = arith.constant 0.000000e+00 : f32
    %52 = vector.shape_cast %51 : vector<1x128xi1> to vector<1x128xi1>
    %53 = vector.broadcast %52 : vector<1x128xi1> to vector<8x128xi1>
    %54 = vector.broadcast %cst_27 : f32 to vector<8x128xf32>
    %55 = arith.select %53, %49, %54 : vector<8x128xi1>, vector<8x128xf32>
    %56 = arith.addf %47, %55 : vector<8x128xf32>
    %cst_28 = arith.constant 0.000000e+00 : f32
    %57 = vector.broadcast %cst_28 : f32 to vector<8x128xf32>
    %58 = arith.maximumf %56, %57 : vector<8x128xf32>
    %c0_29 = arith.constant 0 : index
    %c0_30 = arith.constant 0 : index
    %c0_31 = arith.constant 0 : index
    %59 = vector.load %arg8[%c0_29, %c0_30, %c0_31] : memref<1x8x128xf32, #tpu.memory_space<vmem>>, vector<1x8x128xf32>
    %60 = vector.shape_cast %59 : vector<1x8x128xf32> to vector<8x128xf32>
    %61 = vector.shape_cast %58 : vector<8x128xf32> to vector<1x8x128xf32>
    tpu.vector_store %arg8[%c0_29, %c0_30, %c0_31], %61 {strides = array<i32>} : memref<1x8x128xf32, #tpu.memory_space<vmem>>, vector<1x8x128xf32>,
    return
  }
  func.func @transform_0(%arg0: i32) -> (i32, i32, i32) {
    %c0_i32 = arith.constant 0 : i32
    %c0_i32_0 = arith.constant 0 : i32
    %c0_i32_1 = arith.constant 0 : i32
    return %arg0, %c0_i32, %c0_i32_0 : i32, i32, i32
  }
  func.func @transform_1(%arg0: i32) -> (i32, i32) {
    %c0_i32 = arith.constant 0 : i32
    %c0_i32_0 = arith.constant 0 : i32
    %c0_i32_1 = arith.constant 0 : i32
    return %c0_i32, %c0_i32_0 : i32, i32
  }
  func.func @transform_2(%arg0: i32) -> (i32, i32) {
    %c0_i32 = arith.constant 0 : i32
    %c0_i32_0 = arith.constant 0 : i32
    %c0_i32_1 = arith.constant 0 : i32
    return %c0_i32, %c0_i32_0 : i32, i32
  }
  func.func @transform_3(%arg0: i32) -> (i32, i32, i32) {
    %c0_i32 = arith.constant 0 : i32
    %c0_i32_0 = arith.constant 0 : i32
    %c0_i32_1 = arith.constant 0 : i32
    %c0_i32_2 = arith.constant 0 : i32
    return %c0_i32, %c0_i32_0, %c0_i32_1 : i32, i32, i32
  }
  func.func @transform_4(%arg0: i32) -> (i32, i32) {
    %c0_i32 = arith.constant 0 : i32
    %c0_i32_0 = arith.constant 0 : i32
    %c0_i32_1 = arith.constant 0 : i32
    return %c0_i32, %c0_i32_0 : i32, i32
  }
  func.func @transform_5(%arg0: i32) -> (i32, i32) {
    %c0_i32 = arith.constant 0 : i32
    %c0_i32_0 = arith.constant 0 : i32
    %c0_i32_1 = arith.constant 0 : i32
    return %c0_i32, %c0_i32_0 : i32, i32
  }
  func.func @transform_6(%arg0: i32) -> (i32, i32) {
    %c0_i32 = arith.constant 0 : i32
    %c0_i32_0 = arith.constant 0 : i32
    %c0_i32_1 = arith.constant 0 : i32
    return %c0_i32, %c0_i32_0 : i32, i32
  }
  func.func @transform_7(%arg0: i32) -> (i32, i32, i32) {
    %c0_i32 = arith.constant 0 : i32
    %c0_i32_0 = arith.constant 0 : i32
    %c0_i32_1 = arith.constant 0 : i32
    return %arg0, %c0_i32, %c0_i32_0 : i32, i32, i32
  }
}

</mosaic_0001>

<llo_original>
// kernel: tpu_custom_call.1
$region0: #{tpu_custom_call.1}
  #allocation0 [shape = 'u32[]', space=smem, size = 0x4, offset = 0x4, fixed_abs, tag = 'smem constant byte address 0x4 - core index']
  #allocation1 [shape = 'u32[144,128]{1,0:T(1,128)}', space=vmem, size = 0x12000, scoped, tag = 'internal scratch']
  %s0 = inlined_call_operand.vmem [shape: bf16[2,4,128], index: 0, kind: input, shape index: {}]
  %s1 = inlined_call_operand.vmem [shape: bf16[32,4], index: 1, kind: input, shape index: {}]
  %s2 = inlined_call_operand.vmem [shape: f32[32,1], index: 2, kind: input, shape index: {}]
  %s3 = inlined_call_operand.hbm [shape: bf16[3,128,128], index: 3, kind: input, shape index: {}]
  %s4 = inlined_call_operand.vmem [shape: f32[8,1], index: 4, kind: input, shape index: {}]
  %s5 = inlined_call_operand.vmem [shape: bf16[24,8], index: 5, kind: input, shape index: {}]
  %s6 = inlined_call_operand.vmem [shape: f32[8,1], index: 6, kind: input, shape index: {}]
  %s7 = inlined_call_operand.hbm [shape: f32[2,8,128], index: 7, kind: output, shape index: {}]
  %s8 = sld [smem:[#allocation0]]
  $region65: #{tpu_custom_call.1} parent=0
    _
  %s10 = ssub.s32 1, %s8
  %s11 = scalar_select 0, %s10, %s8
  $region1: #{tpu_custom_call.1} parent=0
    #allocation2 [shape = 'u8[98304]{0}', space=vmem, size = 0x18000, scoped, tag = 'input window, operand 3, single buffered']
    #allocation3 [shape = 's32[2]{0}', space=sflag, size = 0x8, scoped, tag = 'scoped memory for tpu_custom_call.1']
    #allocation4 [shape = 's32[2]{0}', space=sflag, size = 0x8, scoped, tag = 'scoped memory for tpu_custom_call.1']
    #allocation5 [shape = 'u8[8192]{0}', space=vmem, size = 0x2000, scoped, tag = 'output window, operand 0']
    %12 = vsyncpa [#allocation3], 0
    %13 = vsyncpa [#allocation4], 0
    %s14 = scalar_lea.sflag [#allocation4], 1
    %15 = vsyncpa %s14, 0
    loop: start=0, step=1, limit=4
    $region2: #{tpu_custom_call.1} parent=1 // loop_pre_header
      _
    $region3: #{tpu_custom_call.1} parent=1 // loop_header
      %s17 = sphi 0, %s21
      %p18 = scmp.ge.s32.totalorder %s17, 4
      %s27 = sphi 0, %s29
      %s30 = sphi 0, %s27
      %s31 = sphi 0, %s30
      %s47 = sphi 0, %s31
      %s51 = sphi 0, %s51
      %s53 = sphi 0, %s51
      %s54 = sphi 0, %s53
      %s68 = sphi 0, %s54
      %s72 = sphi 0, %s72
      %s74 = sphi 0, %s72
      %s75 = sphi 0, %s74
      %s89 = sphi 0, %s75
      %s93 = sphi 0, %s93
      %s95 = sphi 0, %s93
      %s96 = sphi 0, %s95
      %s110 = sphi 0, %s96
      %s114 = sphi 0, %s114
      %s116 = sphi 0, %s114
      %s117 = sphi 0, %s116
      %s131 = sphi 0, %s117
      %s135 = sphi 0, %s135
      %s137 = sphi 0, %s135
      %s138 = sphi 0, %s137
      %s152 = sphi 0, %s138
      %s156 = sphi 0, %s156
      %s158 = sphi 0, %s156
      %s159 = sphi 0, %s158
      %s173 = sphi 0, %s159
      %s179 = sphi 0, %s181
      %s182 = sphi 0, %s179
      %s183 = sphi 0, %s182
      %s199 = sphi 0, %s183
    $region4: #{tpu_custom_call.1} parent=1 // loop_header_branch
      %20 = sbr.rel (%p18) target = $region8
    $region5: #{tpu_custom_call.1} parent=1 // loop_body
      %s22 = ssub.s32 %s17, 1
      %s23 = ssub.s32 %s17, 2
      %s24 = sadd.s32 %s17, 1
      %s25 = ssub.s32 %s17, %s24
      %p26 = scmp.eq.s32.totalorder %s25, 0
      %s28 = sadd.s32 %s27, 1
      %s29 = scalar_select %p26, %s27, %s28
      %p32 = pneg %p26
      %p33 = scmp.eq.s32.totalorder %s17, 1
      %p34 = por %p32, %p33
      %p35 = scmp.ne.s32.totalorder %s27, %s30
      %p36 = scmp.eq.s32.totalorder %s17, 0
      %p37 = por %p35, %p36
      %p38 = scmp.ne.s32.totalorder %s27, %s30
      %p39 = scmp.eq.s32.totalorder %s22, 1
      %p40 = por %p38, %p39
      %p41 = scmp.ne.s32.totalorder %s30, %s31
      %p42 = scmp.eq.s32.totalorder %s22, 0
      %p43 = por %p41, %p42
      %p44 = scmp.ne.s32.totalorder %s30, %s31
      %p45 = scmp.eq.s32.totalorder %s23, 1
      %p46 = por %p44, %p45
      %p48 = scmp.ne.s32.totalorder %s31, %s47
      %p49 = scmp.eq.s32.totalorder %s23, 0
      %p50 = por %p48, %p49
      %s52 = sadd.s32 %s51, 1
      %p55 = scmp.eq.s32.totalorder %s17, 1
      %p56 = scmp.ne.s32.totalorder %s51, %s53
      %p57 = scmp.eq.s32.totalorder %s17, 0
      %p58 = por %p56, %p57
      %p59 = scmp.ne.s32.totalorder %s51, %s53
      %p60 = scmp.eq.s32.totalorder %s22, 1
      %p61 = por %p59, %p60
      %p62 = scmp.ne.s32.totalorder %s53, %s54
      %p63 = scmp.eq.s32.totalorder %s22, 0
      %p64 = por %p62, %p63
      %p65 = scmp.ne.s32.totalorder %s53, %s54
      %p66 = scmp.eq.s32.totalorder %s23, 1
      %p67 = por %p65, %p66
      %p69 = scmp.ne.s32.totalorder %s54, %s68
      %p70 = scmp.eq.s32.totalorder %s23, 0
      %p71 = por %p69, %p70
      %s73 = sadd.s32 %s72, 1
      %p76 = scmp.eq.s32.totalorder %s17, 1
      %p77 = scmp.ne.s32.totalorder %s72, %s74
      %p78 = scmp.eq.s32.totalorder %s17, 0
      %p79 = por %p77, %p78
      %p80 = scmp.ne.s32.totalorder %s72, %s74
      %p81 = scmp.eq.s32.totalorder %s22, 1
      %p82 = por %p80, %p81
      %p83 = scmp.ne.s32.totalorder %s74, %s75
      %p84 = scmp.eq.s32.totalorder %s22, 0
      %p85 = por %p83, %p84
      %p86 = scmp.ne.s32.totalorder %s74, %s75
      %p87 = scmp.eq.s32.totalorder %s23, 1
      %p88 = por %p86, %p87
      %p90 = scmp.ne.s32.totalorder %s75, %s89
      %p91 = scmp.eq.s32.totalorder %s23, 0
      %p92 = por %p90, %p91
      %s94 = sadd.s32 %s93, 1
      %p97 = scmp.eq.s32.totalorder %s17, 1
      %p98 = scmp.ne.s32.totalorder %s93, %s95
      %p99 = scmp.eq.s32.totalorder %s17, 0
      %p100 = por %p98, %p99
      %p101 = scmp.ne.s32.totalorder %s93, %s95
      %p102 = scmp.eq.s32.totalorder %s22, 1
      %p103 = por %p101, %p102
      %p104 = scmp.ne.s32.totalorder %s95, %s96
      %p105 = scmp.eq.s32.totalorder %s22, 0
      %p106 = por %p104, %p105
      %p107 = scmp.ne.s32.totalorder %s95, %s96
      %p108 = scmp.eq.s32.totalorder %s23, 1
      %p109 = por %p107, %p108
      %p111 = scmp.ne.s32.totalorder %s96, %s110
      %p112 = scmp.eq.s32.totalorder %s23, 0
      %p113 = por %p111, %p112
      %s115 = sadd.s32 %s114, 1
      %p118 = scmp.eq.s32.totalorder %s17, 1
      %p119 = scmp.ne.s32.totalorder %s114, %s116
      %p120 = scmp.eq.s32.totalorder %s17, 0
      %p121 = por %p119, %p120
      %p122 = scmp.ne.s32.totalorder %s114, %s116
      %p123 = scmp.eq.s32.totalorder %s22, 1
      %p124 = por %p122, %p123
      %p125 = scmp.ne.s32.totalorder %s116, %s117
      %p126 = scmp.eq.s32.totalorder %s22, 0
      %p127 = por %p125, %p126
      %p128 = scmp.ne.s32.totalorder %s116, %s117
      %p129 = scmp.eq.s32.totalorder %s23, 1
      %p130 = por %p128, %p129
      %p132 = scmp.ne.s32.totalorder %s117, %s131
      %p133 = scmp.eq.s32.totalorder %s23, 0
      %p134 = por %p132, %p133
      %s136 = sadd.s32 %s135, 1
      %p139 = scmp.eq.s32.totalorder %s17, 1
      %p140 = scmp.ne.s32.totalorder %s135, %s137
      %p141 = scmp.eq.s32.totalorder %s17, 0
      %p142 = por %p140, %p141
      %p143 = scmp.ne.s32.totalorder %s135, %s137
      %p144 = scmp.eq.s32.totalorder %s22, 1
      %p145 = por %p143, %p144
      %p146 = scmp.ne.s32.totalorder %s137, %s138
      %p147 = scmp.eq.s32.totalorder %s22, 0
      %p148 = por %p146, %p147
      %p149 = scmp.ne.s32.totalorder %s137, %s138
      %p150 = scmp.eq.s32.totalorder %s23, 1
      %p151 = por %p149, %p150
      %p153 = scmp.ne.s32.totalorder %s138, %s152
      %p154 = scmp.eq.s32.totalorder %s23, 0
      %p155 = por %p153, %p154
      %s157 = sadd.s32 %s156, 1
      %p160 = scmp.eq.s32.totalorder %s17, 1
      %p161 = scmp.ne.s32.totalorder %s156, %s158
      %p162 = scmp.eq.s32.totalorder %s17, 0
      %p163 = por %p161, %p162
      %p164 = scmp.ne.s32.totalorder %s156, %s158
      %p165 = scmp.eq.s32.totalorder %s22, 1
      %p166 = por %p164, %p165
      %p167 = scmp.ne.s32.totalorder %s158, %s159
      %p168 = scmp.eq.s32.totalorder %s22, 0
      %p169 = por %p167, %p168
      %p170 = scmp.ne.s32.totalorder %s158, %s159
      %p171 = scmp.eq.s32.totalorder %s23, 1
      %p172 = por %p170, %p171
      %p174 = scmp.ne.s32.totalorder %s159, %s173
      %p175 = scmp.eq.s32.totalorder %s23, 0
      %p176 = por %p174, %p175
      %s177 = ssub.s32 %s17, %s24
      %p178 = scmp.eq.s32.totalorder %s177, 0
      %s180 = sadd.s32 %s179, 1
      %s181 = scalar_select %p178, %s179, %s180
      %p184 = pneg %p178
      %p185 = scmp.eq.s32.totalorder %s17, 1
      %p186 = por %p184, %p185
      %p187 = scmp.ne.s32.totalorder %s179, %s182
      %p188 = scmp.eq.s32.totalorder %s17, 0
      %p189 = por %p187, %p188
      %p190 = scmp.ne.s32.totalorder %s179, %s182
      %p191 = scmp.eq.s32.totalorder %s22, 1
      %p192 = por %p190, %p191
      %p193 = scmp.ne.s32.totalorder %s182, %s183
      %p194 = scmp.eq.s32.totalorder %s22, 0
      %p195 = por %p193, %p194
      %p196 = scmp.ne.s32.totalorder %s182, %s183
      %p197 = scmp.eq.s32.totalorder %s23, 1
      %p198 = por %p196, %p197
      %p200 = scmp.ne.s32.totalorder %s183, %s199
      %p201 = scmp.eq.s32.totalorder %s23, 0
      %p202 = por %p200, %p201
      %p203 = scmp.le.s32.totalorder 1, %s17
      %p204 = scmp.lt.s32.totalorder %s17, 3
      %p205 = pnand %p203, %p204
      %p206 = pneg %p205
      // Predicated region
      $region9: #{tpu_custom_call.1} parent=5 // pred_check
        _
      $region10: #{tpu_custom_call.1} parent=5 // pred_check_branch
        %208 = sbr.rel (%p205) target = $region12
      $region11: #{tpu_custom_call.1} parent=5 // pred_region
        %s209 = ssub.s32 %s17, 1
        // Predicated region
        $region13: #{tpu_custom_call.1} parent=11 // pred_check
          %p210 = pneg %p64
        $region14: #{tpu_custom_call.1} parent=11 // pred_check_branch
          %212 = sbr.rel (%p210) target = $region16
        $region15: #{tpu_custom_call.1} parent=11 // pred_region
          _
        $region16: #{tpu_custom_call.1} parent=11 // pred_fallthru
          _
        // Predicated region
        $region17: #{tpu_custom_call.1} parent=11 // pred_check
          %p213 = pneg %p85
        $region18: #{tpu_custom_call.1} parent=11 // pred_check_branch
          %215 = sbr.rel (%p213) target = $region20
        $region19: #{tpu_custom_call.1} parent=11 // pred_region
          _
        $region20: #{tpu_custom_call.1} parent=11 // pred_fallthru
          _
        // Predicated region
        $region21: #{tpu_custom_call.1} parent=11 // pred_check
          %p216 = pneg %p106
        $region22: #{tpu_custom_call.1} parent=11 // pred_check_branch
          %218 = sbr.rel (%p216) target = $region24
        $region23: #{tpu_custom_call.1} parent=11 // pred_region
          %s220 = ssub.s32 3072, 3072
          %221 = vsyncadd [#allocation3], %s220
          %s222 = sshll.u32 [#allocation2], 4
          %s223 = int_to_ptr.vmem [resolvable:$true] %s222
          %228 = dma.hbm_to_vmem [thread:$0]  %s3, 3072, %s223, [#allocation3], 64, 64, 4
        $region24: #{tpu_custom_call.1} parent=11 // pred_fallthru
          _
        // Predicated region
        $region25: #{tpu_custom_call.1} parent=11 // pred_check
          %p229 = pneg %p127
        $region26: #{tpu_custom_call.1} parent=11 // pred_check_branch
          %231 = sbr.rel (%p229) target = $region28
        $region27: #{tpu_custom_call.1} parent=11 // pred_region
          _
        $region28: #{tpu_custom_call.1} parent=11 // pred_fallthru
          _
        // Predicated region
        $region29: #{tpu_custom_call.1} parent=11 // pred_check
          %p232 = pneg %p148
        $region30: #{tpu_custom_call.1} parent=11 // pred_check_branch
          %234 = sbr.rel (%p232) target = $region32
        $region31: #{tpu_custom_call.1} parent=11 // pred_region
          _
        $region32: #{tpu_custom_call.1} parent=11 // pred_fallthru
          _
        // Predicated region
        $region33: #{tpu_custom_call.1} parent=11 // pred_check
          %p235 = pneg %p169
        $region34: #{tpu_custom_call.1} parent=11 // pred_check_branch
          %237 = sbr.rel (%p235) target = $region36
        $region35: #{tpu_custom_call.1} parent=11 // pred_region
          _
        $region36: #{tpu_custom_call.1} parent=11 // pred_fallthru
          _
      $region12: #{tpu_custom_call.1} parent=5 // pred_fallthru
        _
      %p238 = scmp.lt.s32.totalorder %s17, 2
      // Predicated region
      $region37: #{tpu_custom_call.1} parent=5 // pred_check
        %p239 = pneg %p238
      $region38: #{tpu_custom_call.1} parent=5 // pred_check_branch
        %241 = sbr.rel (%p239) target = $region40
      $region39: #{tpu_custom_call.1} parent=5 // pred_region
        // Predicated region
        $region41: #{tpu_custom_call.1} parent=39 // pred_check
          %p242 = pneg %p37
        $region42: #{tpu_custom_call.1} parent=39 // pred_check_branch
          %244 = sbr.rel (%p242) target = $region44
        $region43: #{tpu_custom_call.1} parent=39 // pred_region
          %p245 = scmp.lt.s32.totalorder %s17, 1
          %s246 = scalar_select %p245, %s17, 1
          %s247 = smul.addr %s246, 2
          %s248 = scalar_lea.vmem %s0, %s247
        $region44: #{tpu_custom_call.1} parent=39 // pred_fallthru
          _
      $region40: #{tpu_custom_call.1} parent=5 // pred_fallthru
        _
      %p249 = scmp.le.s32.totalorder 1, %s17
      %p250 = scmp.lt.s32.totalorder %s17, 3
      %p251 = pnand %p249, %p250
      %p252 = pneg %p251
      // Predicated region
      $region45: #{tpu_custom_call.1} parent=5 // pred_check
        _
      $region46: #{tpu_custom_call.1} parent=5 // pred_check_branch
        %254 = sbr.rel (%p251) target = $region48
      $region47: #{tpu_custom_call.1} parent=5 // pred_region
        %s255 = ssub.s32 %s17, 1
        // Predicated region
        $region49: #{tpu_custom_call.1} parent=47 // pred_check
          %p256 = pneg %p106
        $region50: #{tpu_custom_call.1} parent=47 // pred_check_branch
          %258 = sbr.rel (%p256) target = $region52
        $region51: #{tpu_custom_call.1} parent=47 // pred_region
          %259 = dma.done [#allocation3], 3072
        $region52: #{tpu_custom_call.1} parent=47 // pred_fallthru
          _
        %p260 = scmp.lt.s32.totalorder %s22, 1
        %s261 = scalar_select %p260, %s22, 1
        %s262 = smul.addr %s261, 2
        %s263 = scalar_lea.vmem %s0, %s262
        %p264 = pneg %p43
        %p265 = pneg %p40
        %p266 = pneg %p64
        %p267 = pneg %p61
        %p268 = pneg %p85
        %p269 = pneg %p82
        %p270 = pneg %p106
        %p271 = pneg %p103
        %p272 = pneg %p127
        %p273 = pneg %p124
        %p274 = pneg %p148
        %p275 = pneg %p145
        %p276 = pneg %p169
        %p277 = pneg %p166
        %p278 = pneg %p195
        %p279 = pneg %p192
        %s280 = sand.u32 %s182, 1
        %s281 = scalar_lea.sflag [#allocation4], %s280
        %s282 = sand.u32 %s182, 1
        %s283 = smul.addr %s282, 8
        %s284 = scalar_lea.vmem [#allocation5], %s283
        %p285 = scmp.lt.s32.totalorder %s22, 1
        %s286 = scalar_select %p285, %s22, 1
        %s287 = smul.addr %s286, 2
        %s288 = scalar_lea.vmem %s0, %s287
        %v290 = vld [vmem:[%s1] sm:$0xf]
        %v291 = vld [vmem:[%s1 + $0x4] sm:$0xf]
        %v292 = vld [vmem:[%s1 + $0x8] sm:$0xf]
        %v293 = vld [vmem:[%s1 + $0xc] sm:$0xf]
        %v294 = vld [vmem:[%s2] sm:$0xff]
        %v295 = vld [vmem:[%s2 + $0x8] sm:$0xff]
        %v296 = vld [vmem:[%s2 + $0x10] sm:$0xff]
        %v297 = vld [vmem:[%s2 + $0x18] sm:$0xff]
        %v298 = vld [vmem:[%s4] sm:$0xff]
        %v299 = vld [vmem:[%s5] sm:$0xf]
        %v300 = vld [vmem:[%s5 + $0x4] sm:$0xf]
        %v301 = vld [vmem:[%s5 + $0x8] sm:$0xf]
        %v302 = vld [vmem:[%s6] sm:$0xff]
        %v303 = vlaneseq
        %v304 = vand.u32 %v303, 127
        %v305 = vld [vmem:[%s288] sm:$0x3]
        %307 = vset.pattern.permute.xlu0 0
        %308 = vperm.xlu0 %307, %v294
        %v309 = vpop.permute.xlu0 %308
        %312 = vset.pattern.permute.xlu0 0
        %313 = vperm.xlu0 %312, %v295
        %v314 = vpop.permute.xlu0 %313
        %317 = vset.pattern.permute.xlu0 0
        %318 = vperm.xlu0 %317, %v296
        %v319 = vpop.permute.xlu0 %318
        %322 = vset.pattern.permute.xlu0 0
        %323 = vperm.xlu0 %322, %v297
        %v324 = vpop.permute.xlu0 %323
        %v330 = vunpack.c.l.b16 %v290
        %v331 = vunpack.c.l.b16 %v291
        %v332 = vunpack.c.l.b16 %v292
        %v333 = vunpack.c.l.b16 %v293
        %v334 = vpack.c.b16 %v331, %v330
        %v335 = vpack.c.b16 %v333, %v332
        %vm336 = vcmask 31744
        %v338 = vsel %vm336, %v334, 0
        %v341 = vsel %vm336, %v335, 0
        %vm343 = vcmask 1041408
        %v345 = vsel %vm343, %v305, 0
        %347 = vmatprep.subr.bf16.mxu0 0
        %348 = vmatpush1.bf16.msra.mxu0 %v345
        %349 = vmatprep.subr.bf16.mxu0 0
        %350 = vmatpush1.bf16.msra.mxu0 0
        %351 = vmatprep.subr.bf16.mxu0 0
        %352 = vmatpush1.bf16.msra.mxu0 0
        %353 = vmatprep.subr.bf16.mxu0 0
        %354 = vmatpush1.bf16.msra.mxu0 0
        %355 = vmatprep.subr.bf16.mxu0 0
        %356 = vmatpush1.bf16.msra.mxu0 0
        %357 = vmatprep.subr.bf16.mxu0 0
        %358 = vmatpush1.bf16.msra.mxu0 0
        %359 = vmatprep.subr.bf16.mxu0 0
        %360 = vmatpush1.bf16.msra.mxu0 0
        %361 = vmatprep.subr.bf16.mxu0 0
        %362 = vmatpush1.bf16.msra.mxu0 0
        %363 = vmatprep.subr.bf16.mxu0 0
        %364 = vmatpush1.bf16.msra.mxu0 0
        %365 = vmatprep.subr.bf16.mxu0 0
        %366 = vmatpush1.bf16.msra.mxu0 0
        %367 = vmatprep.subr.bf16.mxu0 0
        %368 = vmatpush1.bf16.msra.mxu0 0
        %369 = vmatprep.subr.bf16.mxu0 0
        %370 = vmatpush1.bf16.msra.mxu0 0
        %371 = vmatprep.subr.bf16.mxu0 0
        %372 = vmatpush1.bf16.msra.mxu0 0
        %373 = vmatprep.subr.bf16.mxu0 0
        %374 = vmatpush1.bf16.msra.mxu0 0
        %375 = vmatprep.subr.bf16.mxu0 0
        %376 = vmatpush1.bf16.msra.mxu0 0
        %377 = vmatprep.subr.bf16.mxu0 0
        %378 = vmatpush1.bf16.msra.mxu0 0
        %379 = vmatprep.mubr.bf16.mxu0 0
        %380 = vmatmul.mubr.bf16.gmra.mrb[0].mxu0 %v338
        %v381 = vpop.f32.mrb[0].mxu0
        %v382 = vadd.f32 %v309, %v381
        %v383 = vpop.f32.mrb[0].mxu0
        %v384 = vpop.f32.mrb[0].mxu0
        %v385 = vadd.f32 %v314, %v384
        %v386 = vpop.f32.mrb[0].mxu0
        %387 = vmatprep.mubr.bf16.mxu0 0
        %388 = vmatmul.mubr.bf16.gmra.mrb[0].mxu0 %v341
        %v389 = vpop.f32.mrb[0].mxu0
        %v390 = vadd.f32 %v319, %v389
        %v391 = vpop.f32.mrb[0].mxu0
        %v392 = vpop.f32.mrb[0].mxu0
        %v393 = vadd.f32 %v324, %v392
        %v394 = vpop.f32.mrb[0].mxu0
        %395 = vdwg.mxu0
        %v396 = vpack.c.bf16 %v382, %v382
        %v397 = vld [vmem:[#allocation2] sm:$0xf]
        %v398 = vld [vmem:[#allocation2 + $0x4] sm:$0xf]
        %v399 = vld [vmem:[#allocation2 + $0x8] sm:$0xf]
        %v400 = vld [vmem:[#allocation2 + $0xc] sm:$0xf]
        %v401 = vld [vmem:[#allocation2 + $0x10] sm:$0xf]
        %v402 = vld [vmem:[#allocation2 + $0x14] sm:$0xf]
        %v403 = vld [vmem:[#allocation2 + $0x18] sm:$0xf]
        %v404 = vld [vmem:[#allocation2 + $0x1c] sm:$0xf]
        %v405 = vld [vmem:[#allocation2 + $0x20] sm:$0xf]
        %v406 = vld [vmem:[#allocation2 + $0x24] sm:$0xf]
        %v407 = vld [vmem:[#allocation2 + $0x28] sm:$0xf]
        %v408 = vld [vmem:[#allocation2 + $0x2c] sm:$0xf]
        %v409 = vld [vmem:[#allocation2 + $0x30] sm:$0xf]
        %v410 = vld [vmem:[#allocation2 + $0x34] sm:$0xf]
        %v411 = vld [vmem:[#allocation2 + $0x38] sm:$0xf]
        %v412 = vld [vmem:[#allocation2 + $0x3c] sm:$0xf]
        %414 = vset.pattern.permute.xlu0 0
        %415 = vperm.xlu0 %414, %v298
        %v416 = vpop.permute.xlu0 %415
        %v434 = vunpack.c.l.b16 %v397
        %v435 = vunpack.c.l.b16 %v398
        %v436 = vunpack.c.l.b16 %v399
        %v437 = vunpack.c.l.b16 %v400
        %v438 = vunpack.c.l.b16 %v401
        %v439 = vunpack.c.l.b16 %v402
        %v440 = vunpack.c.l.b16 %v403
        %v441 = vunpack.c.l.b16 %v404
        %v442 = vunpack.c.l.b16 %v405
        %v443 = vunpack.c.l.b16 %v406
        %v444 = vunpack.c.l.b16 %v407
        %v445 = vunpack.c.l.b16 %v408
        %v446 = vunpack.c.l.b16 %v409
        %v447 = vunpack.c.l.b16 %v410
        %v448 = vunpack.c.l.b16 %v411
        %v449 = vunpack.c.l.b16 %v412
        %v450 = vpack.c.b16 %v435, %v434
        %v451 = vpack.c.b16 %v437, %v436
        %v452 = vpack.c.b16 %v439, %v438
        %v453 = vpack.c.b16 %v441, %v440
        %v454 = vpack.c.b16 %v443, %v442
        %v455 = vpack.c.b16 %v445, %v444
        %v456 = vpack.c.b16 %v447, %v446
        %v457 = vpack.c.b16 %v449, %v448
        %466 = vmatprep.subr.bf16.mxu0 0
        %467 = vmatpush1.bf16.msra.mxu0 %v450
        %468 = vmatprep.subr.bf16.mxu0 0
        %469 = vmatpush1.bf16.msra.mxu0 %v451
        %470 = vmatprep.subr.bf16.mxu0 0
        %471 = vmatpush1.bf16.msra.mxu0 %v452
        %472 = vmatprep.subr.bf16.mxu0 0
        %473 = vmatpush1.bf16.msra.mxu0 %v453
        %474 = vmatprep.subr.bf16.mxu0 0
        %475 = vmatpush1.bf16.msra.mxu0 %v454
        %476 = vmatprep.subr.bf16.mxu0 0
        %477 = vmatpush1.bf16.msra.mxu0 %v455
        %478 = vmatprep.subr.bf16.mxu0 0
        %479 = vmatpush1.bf16.msra.mxu0 %v456
        %480 = vmatprep.subr.bf16.mxu0 0
        %481 = vmatpush1.bf16.msra.mxu0 %v457
        %482 = vmatprep.subr.bf16.mxu0 0
        %483 = vmatpush1.bf16.msra.mxu0 0
        %484 = vmatprep.subr.bf16.mxu0 0
        %485 = vmatpush1.bf16.msra.mxu0 0
        %486 = vmatprep.subr.bf16.mxu0 0
        %487 = vmatpush1.bf16.msra.mxu0 0
        %488 = vmatprep.subr.bf16.mxu0 0
        %489 = vmatpush1.bf16.msra.mxu0 0
        %490 = vmatprep.subr.bf16.mxu0 0
        %491 = vmatpush1.bf16.msra.mxu0 0
        %492 = vmatprep.subr.bf16.mxu0 0
        %493 = vmatpush1.bf16.msra.mxu0 0
        %494 = vmatprep.subr.bf16.mxu0 0
        %495 = vmatpush1.bf16.msra.mxu0 0
        %496 = vmatprep.subr.bf16.mxu0 0
        %497 = vmatpush1.bf16.msra.mxu0 0
        %498 = vmatprep.mubr.bf16.mxu0 0
        %499 = vmatmul.mubr.bf16.gmra.mrb[0].mxu0 %v396
        %v500 = vpop.f32.mrb[0].mxu0
        %v501 = vadd.f32 %v416, %v500
        %v502 = vpop.f32.mrb[0].mxu0
        %v503 = vpop.f32.mrb[0].mxu0
        %v504 = vpop.f32.mrb[0].mxu0
        %505 = vdwg.mxu0
        %v506 = vpack.c.bf16 %v385, %v385
        %s507 = scalar_lea.vmem [#allocation2], 64
        %v508 = vld [vmem:[%s507] sm:$0xf]
        %v509 = vld [vmem:[%s507 + $0x4] sm:$0xf]
        %v510 = vld [vmem:[%s507 + $0x8] sm:$0xf]
        %v511 = vld [vmem:[%s507 + $0xc] sm:$0xf]
        %v512 = vld [vmem:[%s507 + $0x10] sm:$0xf]
        %v513 = vld [vmem:[%s507 + $0x14] sm:$0xf]
        %v514 = vld [vmem:[%s507 + $0x18] sm:$0xf]
        %v515 = vld [vmem:[%s507 + $0x1c] sm:$0xf]
        %v516 = vld [vmem:[%s507 + $0x20] sm:$0xf]
        %v517 = vld [vmem:[%s507 + $0x24] sm:$0xf]
        %v518 = vld [vmem:[%s507 + $0x28] sm:$0xf]
        %v519 = vld [vmem:[%s507 + $0x2c] sm:$0xf]
        %v520 = vld [vmem:[%s507 + $0x30] sm:$0xf]
        %v521 = vld [vmem:[%s507 + $0x34] sm:$0xf]
        %v522 = vld [vmem:[%s507 + $0x38] sm:$0xf]
        %v523 = vld [vmem:[%s507 + $0x3c] sm:$0xf]
        %v540 = vunpack.c.l.b16 %v508
        %v541 = vunpack.c.l.b16 %v509
        %v542 = vunpack.c.l.b16 %v510
        %v543 = vunpack.c.l.b16 %v511
        %v544 = vunpack.c.l.b16 %v512
        %v545 = vunpack.c.l.b16 %v513
        %v546 = vunpack.c.l.b16 %v514
        %v547 = vunpack.c.l.b16 %v515
        %v548 = vunpack.c.l.b16 %v516
        %v549 = vunpack.c.l.b16 %v517
        %v550 = vunpack.c.l.b16 %v518
        %v551 = vunpack.c.l.b16 %v519
        %v552 = vunpack.c.l.b16 %v520
        %v553 = vunpack.c.l.b16 %v521
        %v554 = vunpack.c.l.b16 %v522
        %v555 = vunpack.c.l.b16 %v523
        %v556 = vpack.c.b16 %v541, %v540
        %v557 = vpack.c.b16 %v543, %v542
        %v558 = vpack.c.b16 %v545, %v544
        %v559 = vpack.c.b16 %v547, %v546
        %v560 = vpack.c.b16 %v549, %v548
        %v561 = vpack.c.b16 %v551, %v550
        %v562 = vpack.c.b16 %v553, %v552
        %v563 = vpack.c.b16 %v555, %v554
        %572 = vmatprep.subr.bf16.mxu0 0
        %573 = vmatpush1.bf16.msra.mxu0 %v556
        %574 = vmatprep.subr.bf16.mxu0 0
        %575 = vmatpush1.bf16.msra.mxu0 %v557
        %576 = vmatprep.subr.bf16.mxu0 0
        %577 = vmatpush1.bf16.msra.mxu0 %v558
        %578 = vmatprep.subr.bf16.mxu0 0
        %579 = vmatpush1.bf16.msra.mxu0 %v559
        %580 = vmatprep.subr.bf16.mxu0 0
        %581 = vmatpush1.bf16.msra.mxu0 %v560
        %582 = vmatprep.subr.bf16.mxu0 0
        %583 = vmatpush1.bf16.msra.mxu0 %v561
        %584 = vmatprep.subr.bf16.mxu0 0
        %585 = vmatpush1.bf16.msra.mxu0 %v562
        %586 = vmatprep.subr.bf16.mxu0 0
        %587 = vmatpush1.bf16.msra.mxu0 %v563
        %588 = vmatprep.subr.bf16.mxu0 0
        %589 = vmatpush1.bf16.msra.mxu0 0
        %590 = vmatprep.subr.bf16.mxu0 0
        %591 = vmatpush1.bf16.msra.mxu0 0
        %592 = vmatprep.subr.bf16.mxu0 0
        %593 = vmatpush1.bf16.msra.mxu0 0
        %594 = vmatprep.subr.bf16.mxu0 0
        %595 = vmatpush1.bf16.msra.mxu0 0
        %596 = vmatprep.subr.bf16.mxu0 0
        %597 = vmatpush1.bf16.msra.mxu0 0
        %598 = vmatprep.subr.bf16.mxu0 0
        %599 = vmatpush1.bf16.msra.mxu0 0
        %600 = vmatprep.subr.bf16.mxu0 0
        %601 = vmatpush1.bf16.msra.mxu0 0
        %602 = vmatprep.subr.bf16.mxu0 0
        %603 = vmatpush1.bf16.msra.mxu0 0
        %604 = vmatprep.mubr.bf16.mxu0 0
        %605 = vmatmul.mubr.bf16.gmra.mrb[0].mxu0 %v506
        %v606 = vpop.f32.mrb[0].mxu0
        %v607 = vadd.f32 0.0, %v606
        %v608 = vpop.f32.mrb[0].mxu0
        %v609 = vpop.f32.mrb[0].mxu0
        %v610 = vpop.f32.mrb[0].mxu0
        %611 = vdwg.mxu0
        %v612 = vadd.f32 %v501, %v607
        %v613 = vpack.c.bf16 %v390, %v390
        %s614 = scalar_lea.vmem [#allocation2], 128
        %v615 = vld [vmem:[%s614] sm:$0xf]
        %v616 = vld [vmem:[%s614 + $0x4] sm:$0xf]
        %v617 = vld [vmem:[%s614 + $0x8] sm:$0xf]
        %v618 = vld [vmem:[%s614 + $0xc] sm:$0xf]
        %v619 = vld [vmem:[%s614 + $0x10] sm:$0xf]
        %v620 = vld [vmem:[%s614 + $0x14] sm:$0xf]
        %v621 = vld [vmem:[%s614 + $0x18] sm:$0xf]
        %v622 = vld [vmem:[%s614 + $0x1c] sm:$0xf]
        %v623 = vld [vmem:[%s614 + $0x20] sm:$0xf]
        %v624 = vld [vmem:[%s614 + $0x24] sm:$0xf]
        %v625 = vld [vmem:[%s614 + $0x28] sm:$0xf]
        %v626 = vld [vmem:[%s614 + $0x2c] sm:$0xf]
        %v627 = vld [vmem:[%s614 + $0x30] sm:$0xf]
        %v628 = vld [vmem:[%s614 + $0x34] sm:$0xf]
        %v629 = vld [vmem:[%s614 + $0x38] sm:$0xf]
        %v630 = vld [vmem:[%s614 + $0x3c] sm:$0xf]
        %v647 = vunpack.c.l.b16 %v615
        %v648 = vunpack.c.l.b16 %v616
        %v649 = vunpack.c.l.b16 %v617
        %v650 = vunpack.c.l.b16 %v618
        %v651 = vunpack.c.l.b16 %v619
        %v652 = vunpack.c.l.b16 %v620
        %v653 = vunpack.c.l.b16 %v621
        %v654 = vunpack.c.l.b16 %v622
        %v655 = vunpack.c.l.b16 %v623
        %v656 = vunpack.c.l.b16 %v624
        %v657 = vunpack.c.l.b16 %v625
        %v658 = vunpack.c.l.b16 %v626
        %v659 = vunpack.c.l.b16 %v627
        %v660 = vunpack.c.l.b16 %v628
        %v661 = vunpack.c.l.b16 %v629
        %v662 = vunpack.c.l.b16 %v630
        %v663 = vpack.c.b16 %v648, %v647
        %v664 = vpack.c.b16 %v650, %v649
        %v665 = vpack.c.b16 %v652, %v651
        %v666 = vpack.c.b16 %v654, %v653
        %v667 = vpack.c.b16 %v656, %v655
        %v668 = vpack.c.b16 %v658, %v657
        %v669 = vpack.c.b16 %v660, %v659
        %v670 = vpack.c.b16 %v662, %v661
        %679 = vmatprep.subr.bf16.mxu0 0
        %680 = vmatpush1.bf16.msra.mxu0 %v663
        %681 = vmatprep.subr.bf16.mxu0 0
        %682 = vmatpush1.bf16.msra.mxu0 %v664
        %683 = vmatprep.subr.bf16.mxu0 0
        %684 = vmatpush1.bf16.msra.mxu0 %v665
        %685 = vmatprep.subr.bf16.mxu0 0
        %686 = vmatpush1.bf16.msra.mxu0 %v666
        %687 = vmatprep.subr.bf16.mxu0 0
        %688 = vmatpush1.bf16.msra.mxu0 %v667
        %689 = vmatprep.subr.bf16.mxu0 0
        %690 = vmatpush1.bf16.msra.mxu0 %v668
        %691 = vmatprep.subr.bf16.mxu0 0
        %692 = vmatpush1.bf16.msra.mxu0 %v669
        %693 = vmatprep.subr.bf16.mxu0 0
        %694 = vmatpush1.bf16.msra.mxu0 %v670
        %695 = vmatprep.subr.bf16.mxu0 0
        %696 = vmatpush1.bf16.msra.mxu0 0
        %697 = vmatprep.subr.bf16.mxu0 0
        %698 = vmatpush1.bf16.msra.mxu0 0
        %699 = vmatprep.subr.bf16.mxu0 0
        %700 = vmatpush1.bf16.msra.mxu0 0
        %701 = vmatprep.subr.bf16.mxu0 0
        %702 = vmatpush1.bf16.msra.mxu0 0
        %703 = vmatprep.subr.bf16.mxu0 0
        %704 = vmatpush1.bf16.msra.mxu0 0
        %705 = vmatprep.subr.bf16.mxu0 0
        %706 = vmatpush1.bf16.msra.mxu0 0
        %707 = vmatprep.subr.bf16.mxu0 0
        %708 = vmatpush1.bf16.msra.mxu0 0
        %709 = vmatprep.subr.bf16.mxu0 0
        %710 = vmatpush1.bf16.msra.mxu0 0
        %711 = vmatprep.mubr.bf16.mxu0 0
        %712 = vmatmul.mubr.bf16.gmra.mrb[0].mxu0 %v613
        %v713 = vpop.f32.mrb[0].mxu0
        %v714 = vadd.f32 0.0, %v713
        %v715 = vpop.f32.mrb[0].mxu0
        %v716 = vpop.f32.mrb[0].mxu0
        %v717 = vpop.f32.mrb[0].mxu0
        %718 = vdwg.mxu0
        %v719 = vadd.f32 %v612, %v714
        %v720 = vmax.f32 %v719, 0.0
        %v721 = vpack.c.bf16 %v720, %v720
        %v725 = vunpack.c.l.b16 %v299
        %v726 = vunpack.c.l.b16 %v300
        %v727 = vunpack.c.l.b16 %v301
        %v728 = vpack.c.b16 %v726, %v725
        %v729 = vpack.c.b16 %v727, %v727
        %vm730 = vcmask 64512
        %v732 = vsel %vm730, %v728, 0
        %v735 = vsel %vm730, %v729, 0
        %vm737 = vcmask 1043456
        %v739 = vsel %vm737, %v721, 0
        %741 = vmatprep.subr.bf16.mxu0 0
        %742 = vmatpush1.bf16.msra.mxu0 %v739
        %743 = vmatprep.subr.bf16.mxu0 0
        %744 = vmatpush1.bf16.msra.mxu0 0
        %745 = vmatprep.subr.bf16.mxu0 0
        %746 = vmatpush1.bf16.msra.mxu0 0
        %747 = vmatprep.subr.bf16.mxu0 0
        %748 = vmatpush1.bf16.msra.mxu0 0
        %749 = vmatprep.subr.bf16.mxu0 0
        %750 = vmatpush1.bf16.msra.mxu0 0
        %751 = vmatprep.subr.bf16.mxu0 0
        %752 = vmatpush1.bf16.msra.mxu0 0
        %753 = vmatprep.subr.bf16.mxu0 0
        %754 = vmatpush1.bf16.msra.mxu0 0
        %755 = vmatprep.subr.bf16.mxu0 0
        %756 = vmatpush1.bf16.msra.mxu0 0
        %757 = vmatprep.subr.bf16.mxu0 0
        %758 = vmatpush1.bf16.msra.mxu0 0
        %759 = vmatprep.subr.bf16.mxu0 0
        %760 = vmatpush1.bf16.msra.mxu0 0
        %761 = vmatprep.subr.bf16.mxu0 0
        %762 = vmatpush1.bf16.msra.mxu0 0
        %763 = vmatprep.subr.bf16.mxu0 0
        %764 = vmatpush1.bf16.msra.mxu0 0
        %765 = vmatprep.subr.bf16.mxu0 0
        %766 = vmatpush1.bf16.msra.mxu0 0
        %767 = vmatprep.subr.bf16.mxu0 0
        %768 = vmatpush1.bf16.msra.mxu0 0
        %769 = vmatprep.subr.bf16.mxu0 0
        %770 = vmatpush1.bf16.msra.mxu0 0
        %771 = vmatprep.subr.bf16.mxu0 0
        %772 = vmatpush1.bf16.msra.mxu0 0
        %773 = vmatprep.mubr.bf16.mxu0 0
        %774 = vmatmul.mubr.bf16.gmra.mrb[0].mxu0 %v732
        %v775 = vpop.f32.mrb[0].mxu0
        %v776 = vadd.f32 0.0, %v775
        %v777 = vpop.f32.mrb[0].mxu0
        %v778 = vpop.f32.mrb[0].mxu0
        %v779 = vadd.f32 0.0, %v778
        %v780 = vpop.f32.mrb[0].mxu0
        %781 = vmatprep.mubr.bf16.mxu0 0
        %782 = vmatmul.mubr.bf16.gmra.mrb[0].mxu0 %v735
        %v783 = vpop.f32.mrb[0].mxu0
        %v784 = vadd.f32 0.0, %v783
        %v785 = vpop.f32.mrb[0].mxu0
        %v786 = vpop.f32.mrb[0].mxu0
        %v787 = vpop.f32.mrb[0].mxu0
        %788 = vdwg.mxu0
        %790 = vset.pattern.permute.xlu0 0
        %791 = vperm.xlu0 %790, %v302
        %v792 = vpop.permute.xlu0 %791
        %v794 = vadd.f32 %v792, %v393
        %v795 = vadd.f32 %v794, %v779
        %796 = vrot.lane.b32.xlu0 %v776, 16
        %v797 = vpop.permute.xlu0 %796
        %vm798 = vcmp.ge.s32.totalorder %v304, 16
        %v799 = vsel %vm798, 1, 0
        %vm800 = vcmp.eq.s32.totalorder %v799, 1
        %v801 = vsel %vm800, %v797, 0.0
        %v802 = vadd.f32 %v795, %v801
        %803 = vrot.lane.b32.xlu0 %v784, 112
        %v804 = vpop.permute.xlu0 %803
        %vm805 = vcmp.lt.s32.totalorder %v304, 112
        %v806 = vsel %vm805, 1, 0
        %vm807 = vcmp.eq.s32.totalorder %v806, 1
        %v808 = vsel %vm807, %v804, 0.0
        %v809 = vadd.f32 %v802, %v808
        %v810 = vmax.f32 %v809, 0.0
        %811 = vst [vmem:[%s284] sm:$0xff] %v810
        %s812 = sand.u32 %s182, 1
        %s813 = scalar_lea.sflag [#allocation4], %s812
        %s814 = sand.u32 %s182, 1
        %s815 = smul.addr %s814, 8
        %s816 = scalar_lea.vmem [#allocation5], %s815
        // Predicated region
        $region53: #{tpu_custom_call.1} parent=47 // pred_check
          %p817 = pneg %p192
        $region54: #{tpu_custom_call.1} parent=47 // pred_check_branch
          %819 = sbr.rel (%p817) target = $region56
        $region55: #{tpu_custom_call.1} parent=47 // pred_region
          %s821 = ssub.s32 128, 128
          %822 = vsyncadd %s813, %s821
          %s823 = smul.addr %s22, 128
          %s824 = scalar_lea.hbm %s7, %s823
          %s826 = sshll.u32 %s816, 4
          %s827 = int_to_ptr.vmem [resolvable:$true] %s826
          %829 = dma.vmem_to_hbm [thread:$0]  %s827, 128, %s824, %s813
        $region56: #{tpu_custom_call.1} parent=47 // pred_fallthru
          _
      $region48: #{tpu_custom_call.1} parent=5 // pred_fallthru
        _
      %p830 = scmp.le.s32.totalorder 2, %s17
      // Predicated region
      $region57: #{tpu_custom_call.1} parent=5 // pred_check
        %p831 = pneg %p830
      $region58: #{tpu_custom_call.1} parent=5 // pred_check_branch
        %833 = sbr.rel (%p831) target = $region60
      $region59: #{tpu_custom_call.1} parent=5 // pred_region
        %s834 = ssub.s32 %s17, 2
        // Predicated region
        $region61: #{tpu_custom_call.1} parent=59 // pred_check
          %p835 = pneg %p198
        $region62: #{tpu_custom_call.1} parent=59 // pred_check_branch
          %837 = sbr.rel (%p835) target = $region64
        $region63: #{tpu_custom_call.1} parent=59 // pred_region
          %s838 = sand.u32 %s183, 1
          %s839 = scalar_lea.sflag [#allocation4], %s838
          %s840 = sand.u32 %s183, 1
          %s841 = smul.addr %s840, 8
          %s842 = scalar_lea.vmem [#allocation5], %s841
          %843 = dma.done %s839, 128
        $region64: #{tpu_custom_call.1} parent=59 // pred_fallthru
          _
      $region60: #{tpu_custom_call.1} parent=5 // pred_fallthru
        _
    $region6: #{tpu_custom_call.1} parent=1 // loop_footer
      %s21 = sadd.s32 1, %s17
    $region7: #{tpu_custom_call.1} parent=1 // loop_footer_branch
      %16 = sbr.rel target = $region3
    $region8: #{tpu_custom_call.1} parent=1 // loop_exit
      _
    %844 = vsyncpa [#allocation3], 1
    %s845 = scalar_lea.sflag [#allocation3], 1
    %846 = vsyncpa %s845, 1
    %847 = vsyncpa [#allocation4], 1
    %s848 = scalar_lea.sflag [#allocation4], 1
    %849 = vsyncpa %s848, 1

// kernel: tpu_custom_call.1
$region0: #{tpu_custom_call.1}
  #allocation0 [shape = 'u32[]', space=smem, size = 0x4, offset = 0x4, fixed_abs, tag = 'smem constant byte address 0x4 - core index']
  #allocation1 [shape = 'u32[144,128]{1,0:T(1,128)}', space=vmem, size = 0x12000, scoped, tag = 'internal scratch']
  %s0 = inlined_call_operand.vmem [shape: bf16[2,4,128], index: 0, kind: input, shape index: {}]
  %s1 = inlined_call_operand.vmem [shape: bf16[32,4], index: 1, kind: input, shape index: {}]
  %s2 = inlined_call_operand.vmem [shape: f32[32,1], index: 2, kind: input, shape index: {}]
  %s3 = inlined_call_operand.hbm [shape: bf16[3,128,128], index: 3, kind: input, shape index: {}]
  %s4 = inlined_call_operand.vmem [shape: f32[8,1], index: 4, kind: input, shape index: {}]
  %s5 = inlined_call_operand.vmem [shape: bf16[24,8], index: 5, kind: input, shape index: {}]
  %s6 = inlined_call_operand.vmem [shape: f32[8,1], index: 6, kind: input, shape index: {}]
  %s7 = inlined_call_operand.hbm [shape: f32[2,8,128], index: 7, kind: output, shape index: {}]
  %s8 = sld [smem:[#allocation0]]
  $region65: #{tpu_custom_call.1} parent=0
    _
  %s10 = ssub.s32 1, %s8
  %s11 = scalar_select 0, %s10, %s8
  $region1: #{tpu_custom_call.1} parent=0
    #allocation2 [shape = 'u8[98304]{0}', space=vmem, size = 0x18000, scoped, tag = 'input window, operand 3, single buffered']
    #allocation3 [shape = 's32[2]{0}', space=sflag, size = 0x8, scoped, tag = 'scoped memory for tpu_custom_call.1']
    #allocation4 [shape = 's32[2]{0}', space=sflag, size = 0x8, scoped, tag = 'scoped memory for tpu_custom_call.1']
    #allocation5 [shape = 'u8[8192]{0}', space=vmem, size = 0x2000, scoped, tag = 'output window, operand 0']
    %12 = vsyncpa [#allocation3], 0
    %13 = vsyncpa [#allocation4], 0
    %s14 = scalar_lea.sflag [#allocation4], 1
    %15 = vsyncpa %s14, 0
    loop: start=0, step=1, limit=4
    $region2: #{tpu_custom_call.1} parent=1 // loop_pre_header
      _
    $region3: #{tpu_custom_call.1} parent=1 // loop_header
      %s17 = sphi 0, %s21
      %p18 = scmp.ge.s32.totalorder %s17, 4
      %s27 = sphi 0, %s29
      %s30 = sphi 0, %s27
      %s31 = sphi 0, %s30
      %s47 = sphi 0, %s31
      %s51 = sphi 0, %s51
      %s53 = sphi 0, %s51
      %s54 = sphi 0, %s53
      %s68 = sphi 0, %s54
      %s72 = sphi 0, %s72
      %s74 = sphi 0, %s72
      %s75 = sphi 0, %s74
      %s89 = sphi 0, %s75
      %s93 = sphi 0, %s93
      %s95 = sphi 0, %s93
      %s96 = sphi 0, %s95
      %s110 = sphi 0, %s96
      %s114 = sphi 0, %s114
      %s116 = sphi 0, %s114
      %s117 = sphi 0, %s116
      %s131 = sphi 0, %s117
      %s135 = sphi 0, %s135
      %s137 = sphi 0, %s135
      %s138 = sphi 0, %s137
      %s152 = sphi 0, %s138
      %s156 = sphi 0, %s156
      %s158 = sphi 0, %s156
      %s159 = sphi 0, %s158
      %s173 = sphi 0, %s159
      %s179 = sphi 0, %s181
      %s182 = sphi 0, %s179
      %s183 = sphi 0, %s182
      %s199 = sphi 0, %s183
    $region4: #{tpu_custom_call.1} parent=1 // loop_header_branch
      %20 = sbr.rel (%p18) target = $region8
    $region5: #{tpu_custom_call.1} parent=1 // loop_body
      %s22 = ssub.s32 %s17, 1
      %s23 = ssub.s32 %s17, 2
      %s24 = sadd.s32 %s17, 1
      %s25 = ssub.s32 %s17, %s24
      %p26 = scmp.eq.s32.totalorder %s25, 0
      %s28 = sadd.s32 %s27, 1
      %s29 = scalar_select %p26, %s27, %s28
      %p32 = pneg %p26
      %p33 = scmp.eq.s32.totalorder %s17, 1
      %p34 = por %p32, %p33
      %p35 = scmp.ne.s32.totalorder %s27, %s30
      %p36 = scmp.eq.s32.totalorder %s17, 0
      %p37 = por %p35, %p36
      %p38 = scmp.ne.s32.totalorder %s27, %s30
      %p39 = scmp.eq.s32.totalorder %s22, 1
      %p40 = por %p38, %p39
      %p41 = scmp.ne.s32.totalorder %s30, %s31
      %p42 = scmp.eq.s32.totalorder %s22, 0
      %p43 = por %p41, %p42
      %p44 = scmp.ne.s32.totalorder %s30, %s31
      %p45 = scmp.eq.s32.totalorder %s23, 1
      %p46 = por %p44, %p45
      %p48 = scmp.ne.s32.totalorder %s31, %s47
      %p49 = scmp.eq.s32.totalorder %s23, 0
      %p50 = por %p48, %p49
      %s52 = sadd.s32 %s51, 1
      %p55 = scmp.eq.s32.totalorder %s17, 1
      %p56 = scmp.ne.s32.totalorder %s51, %s53
      %p57 = scmp.eq.s32.totalorder %s17, 0
      %p58 = por %p56, %p57
      %p59 = scmp.ne.s32.totalorder %s51, %s53
      %p60 = scmp.eq.s32.totalorder %s22, 1
      %p61 = por %p59, %p60
      %p62 = scmp.ne.s32.totalorder %s53, %s54
      %p63 = scmp.eq.s32.totalorder %s22, 0
      %p64 = por %p62, %p63
      %p65 = scmp.ne.s32.totalorder %s53, %s54
      %p66 = scmp.eq.s32.totalorder %s23, 1
      %p67 = por %p65, %p66
      %p69 = scmp.ne.s32.totalorder %s54, %s68
      %p70 = scmp.eq.s32.totalorder %s23, 0
      %p71 = por %p69, %p70
      %s73 = sadd.s32 %s72, 1
      %p76 = scmp.eq.s32.totalorder %s17, 1
      %p77 = scmp.ne.s32.totalorder %s72, %s74
      %p78 = scmp.eq.s32.totalorder %s17, 0
      %p79 = por %p77, %p78
      %p80 = scmp.ne.s32.totalorder %s72, %s74
      %p81 = scmp.eq.s32.totalorder %s22, 1
      %p82 = por %p80, %p81
      %p83 = scmp.ne.s32.totalorder %s74, %s75
      %p84 = scmp.eq.s32.totalorder %s22, 0
      %p85 = por %p83, %p84
      %p86 = scmp.ne.s32.totalorder %s74, %s75
      %p87 = scmp.eq.s32.totalorder %s23, 1
      %p88 = por %p86, %p87
      %p90 = scmp.ne.s32.totalorder %s75, %s89
      %p91 = scmp.eq.s32.totalorder %s23, 0
      %p92 = por %p90, %p91
      %s94 = sadd.s32 %s93, 1
      %p97 = scmp.eq.s32.totalorder %s17, 1
      %p98 = scmp.ne.s32.totalorder %s93, %s95
      %p99 = scmp.eq.s32.totalorder %s17, 0
      %p100 = por %p98, %p99
      %p101 = scmp.ne.s32.totalorder %s93, %s95
      %p102 = scmp.eq.s32.totalorder %s22, 1
      %p103 = por %p101, %p102
      %p104 = scmp.ne.s32.totalorder %s95, %s96
      %p105 = scmp.eq.s32.totalorder %s22, 0
      %p106 = por %p104, %p105
      %p107 = scmp.ne.s32.totalorder %s95, %s96
      %p108 = scmp.eq.s32.totalorder %s23, 1
      %p109 = por %p107, %p108
      %p111 = scmp.ne.s32.totalorder %s96, %s110
      %p112 = scmp.eq.s32.totalorder %s23, 0
      %p113 = por %p111, %p112
      %s115 = sadd.s32 %s114, 1
      %p118 = scmp.eq.s32.totalorder %s17, 1
      %p119 = scmp.ne.s32.totalorder %s114, %s116
      %p120 = scmp.eq.s32.totalorder %s17, 0
      %p121 = por %p119, %p120
      %p122 = scmp.ne.s32.totalorder %s114, %s116
      %p123 = scmp.eq.s32.totalorder %s22, 1
      %p124 = por %p122, %p123
      %p125 = scmp.ne.s32.totalorder %s116, %s117
      %p126 = scmp.eq.s32.totalorder %s22, 0
      %p127 = por %p125, %p126
      %p128 = scmp.ne.s32.totalorder %s116, %s117
      %p129 = scmp.eq.s32.totalorder %s23, 1
      %p130 = por %p128, %p129
      %p132 = scmp.ne.s32.totalorder %s117, %s131
      %p133 = scmp.eq.s32.totalorder %s23, 0
      %p134 = por %p132, %p133
      %s136 = sadd.s32 %s135, 1
      %p139 = scmp.eq.s32.totalorder %s17, 1
      %p140 = scmp.ne.s32.totalorder %s135, %s137
      %p141 = scmp.eq.s32.totalorder %s17, 0
      %p142 = por %p140, %p141
      %p143 = scmp.ne.s32.totalorder %s135, %s137
      %p144 = scmp.eq.s32.totalorder %s22, 1
      %p145 = por %p143, %p144
      %p146 = scmp.ne.s32.totalorder %s137, %s138
      %p147 = scmp.eq.s32.totalorder %s22, 0
      %p148 = por %p146, %p147
      %p149 = scmp.ne.s32.totalorder %s137, %s138
      %p150 = scmp.eq.s32.totalorder %s23, 1
      %p151 = por %p149, %p150
      %p153 = scmp.ne.s32.totalorder %s138, %s152
      %p154 = scmp.eq.s32.totalorder %s23, 0
      %p155 = por %p153, %p154
      %s157 = sadd.s32 %s156, 1
      %p160 = scmp.eq.s32.totalorder %s17, 1
      %p161 = scmp.ne.s32.totalorder %s156, %s158
      %p162 = scmp.eq.s32.totalorder %s17, 0
      %p163 = por %p161, %p162
      %p164 = scmp.ne.s32.totalorder %s156, %s158
      %p165 = scmp.eq.s32.totalorder %s22, 1
      %p166 = por %p164, %p165
      %p167 = scmp.ne.s32.totalorder %s158, %s159
      %p168 = scmp.eq.s32.totalorder %s22, 0
      %p169 = por %p167, %p168
      %p170 = scmp.ne.s32.totalorder %s158, %s159
      %p171 = scmp.eq.s32.totalorder %s23, 1
      %p172 = por %p170, %p171
      %p174 = scmp.ne.s32.totalorder %s159, %s173
      %p175 = scmp.eq.s32.totalorder %s23, 0
      %p176 = por %p174, %p175
      %s177 = ssub.s32 %s17, %s24
      %p178 = scmp.eq.s32.totalorder %s177, 0
      %s180 = sadd.s32 %s179, 1
      %s181 = scalar_select %p178, %s179, %s180
      %p184 = pneg %p178
      %p185 = scmp.eq.s32.totalorder %s17, 1
      %p186 = por %p184, %p185
      %p187 = scmp.ne.s32.totalorder %s179, %s182
      %p188 = scmp.eq.s32.totalorder %s17, 0
      %p189 = por %p187, %p188
      %p190 = scmp.ne.s32.totalorder %s179, %s182
      %p191 = scmp.eq.s32.totalorder %s22, 1
      %p192 = por %p190, %p191
      %p193 = scmp.ne.s32.totalorder %s182, %s183
      %p194 = scmp.eq.s32.totalorder %s22, 0
      %p195 = por %p193, %p194
      %p196 = scmp.ne.s32.totalorder %s182, %s183
      %p197 = scmp.eq.s32.totalorder %s23, 1
      %p198 = por %p196, %p197
      %p200 = scmp.ne.s32.totalorder %s183, %s199
      %p201 = scmp.eq.s32.totalorder %s23, 0
      %p202 = por %p200, %p201
      %p203 = scmp.le.s32.totalorder 1, %s17
      %p204 = scmp.lt.s32.totalorder %s17, 3
      %p205 = pnand %p203, %p204
      %p206 = pneg %p205
      // Predicated region
      $region9: #{tpu_custom_call.1} parent=5 // pred_check
        _
      $region10: #{tpu_custom_call.1} parent=5 // pred_check_branch
        %208 = sbr.rel (%p205) target = $region12
      $region11: #{tpu_custom_call.1} parent=5 // pred_region
        %s209 = ssub.s32 %s17, 1
        // Predicated region
        $region13: #{tpu_custom_call.1} parent=11 // pred_check
          %p210 = pneg %p64
        $region14: #{tpu_custom_call.1} parent=11 // pred_check_branch
          %212 = sbr.rel (%p210) target = $region16
        $region15: #{tpu_custom_call.1} parent=11 // pred_region
          _
        $region16: #{tpu_custom_call.1} parent=11 // pred_fallthru
          _
        // Predicated region
        $region17: #{tpu_custom_call.1} parent=11 // pred_check
          %p213 = pneg %p85
        $region18: #{tpu_custom_call.1} parent=11 // pred_check_branch
          %215 = sbr.rel (%p213) target = $region20
        $region19: #{tpu_custom_call.1} parent=11 // pred_region
          _
        $region20: #{tpu_custom_call.1} parent=11 // pred_fallthru
          _
        // Predicated region
        $region21: #{tpu_custom_call.1} parent=11 // pred_check
          %p216 = pneg %p106
        $region22: #{tpu_custom_call.1} parent=11 // pred_check_branch
          %218 = sbr.rel (%p216) target = $region24
        $region23: #{tpu_custom_call.1} parent=11 // pred_region
          %s220 = ssub.s32 3072, 3072
          %221 = vsyncadd [#allocation3], %s220
          %s222 = sshll.u32 [#allocation2], 4
          %s223 = int_to_ptr.vmem [resolvable:$true] %s222
          %228 = dma.hbm_to_vmem [thread:$0]  %s3, 3072, %s223, [#allocation3], 64, 64, 4
        $region24: #{tpu_custom_call.1} parent=11 // pred_fallthru
          _
        // Predicated region
        $region25: #{tpu_custom_call.1} parent=11 // pred_check
          %p229 = pneg %p127
        $region26: #{tpu_custom_call.1} parent=11 // pred_check_branch
          %231 = sbr.rel (%p229) target = $region28
        $region27: #{tpu_custom_call.1} parent=11 // pred_region
          _
        $region28: #{tpu_custom_call.1} parent=11 // pred_fallthru
          _
        // Predicated region
        $region29: #{tpu_custom_call.1} parent=11 // pred_check
          %p232 = pneg %p148
        $region30: #{tpu_custom_call.1} parent=11 // pred_check_branch
          %234 = sbr.rel (%p232) target = $region32
        $region31: #{tpu_custom_call.1} parent=11 // pred_region
          _
        $region32: #{tpu_custom_call.1} parent=11 // pred_fallthru
          _
        // Predicated region
        $region33: #{tpu_custom_call.1} parent=11 // pred_check
          %p235 = pneg %p169
        $region34: #{tpu_custom_call.1} parent=11 // pred_check_branch
          %237 = sbr.rel (%p235) target = $region36
        $region35: #{tpu_custom_call.1} parent=11 // pred_region
          _
        $region36: #{tpu_custom_call.1} parent=11 // pred_fallthru
          _
      $region12: #{tpu_custom_call.1} parent=5 // pred_fallthru
        _
      %p238 = scmp.lt.s32.totalorder %s17, 2
      // Predicated region
      $region37: #{tpu_custom_call.1} parent=5 // pred_check
        %p239 = pneg %p238
      $region38: #{tpu_custom_call.1} parent=5 // pred_check_branch
        %241 = sbr.rel (%p239) target = $region40
      $region39: #{tpu_custom_call.1} parent=5 // pred_region
        // Predicated region
        $region41: #{tpu_custom_call.1} parent=39 // pred_check
          %p242 = pneg %p37
        $region42: #{tpu_custom_call.1} parent=39 // pred_check_branch
          %244 = sbr.rel (%p242) target = $region44
        $region43: #{tpu_custom_call.1} parent=39 // pred_region
          %p245 = scmp.lt.s32.totalorder %s17, 1
          %s246 = scalar_select %p245, %s17, 1
          %s247 = smul.addr %s246, 2
          %s248 = scalar_lea.vmem %s0, %s247
        $region44: #{tpu_custom_call.1} parent=39 // pred_fallthru
          _
      $region40: #{tpu_custom_call.1} parent=5 // pred_fallthru
        _
      %p249 = scmp.le.s32.totalorder 1, %s17
      %p250 = scmp.lt.s32.totalorder %s17, 3
      %p251 = pnand %p249, %p250
      %p252 = pneg %p251
      // Predicated region
      $region45: #{tpu_custom_call.1} parent=5 // pred_check
        _
      $region46: #{tpu_custom_call.1} parent=5 // pred_check_branch
        %254 = sbr.rel (%p251) target = $region48
      $region47: #{tpu_custom_call.1} parent=5 // pred_region
        %s255 = ssub.s32 %s17, 1
        // Predicated region
        $region49: #{tpu_custom_call.1} parent=47 // pred_check
          %p256 = pneg %p106
        $region50: #{tpu_custom_call.1} parent=47 // pred_check_branch
          %258 = sbr.rel (%p256) target = $region52
        $region51: #{tpu_custom_call.1} parent=47 // pred_region
          %259 = dma.done [#allocation3], 3072
        $region52: #{tpu_custom_call.1} parent=47 // pred_fallthru
          _
        %p260 = scmp.lt.s32.totalorder %s22, 1
        %s261 = scalar_select %p260, %s22, 1
        %s262 = smul.addr %s261, 2
        %s263 = scalar_lea.vmem %s0, %s262
        %p264 = pneg %p43
        %p265 = pneg %p40
        %p266 = pneg %p64
        %p267 = pneg %p61
        %p268 = pneg %p85
        %p269 = pneg %p82
        %p270 = pneg %p106
        %p271 = pneg %p103
        %p272 = pneg %p127
        %p273 = pneg %p124
        %p274 = pneg %p148
        %p275 = pneg %p145
        %p276 = pneg %p169
        %p277 = pneg %p166
        %p278 = pneg %p195
        %p279 = pneg %p192
        %s280 = sand.u32 %s182, 1
        %s281 = scalar_lea.sflag [#allocation4], %s280
        %s282 = sand.u32 %s182, 1
        %s283 = smul.addr %s282, 8
        %s284 = scalar_lea.vmem [#allocation5], %s283
        %p285 = scmp.lt.s32.totalorder %s22, 1
        %s286 = scalar_select %p285, %s22, 1
        %s287 = smul.addr %s286, 2
        %s288 = scalar_lea.vmem %s0, %s287
        %v290 = vld [vmem:[%s1] sm:$0xf]
        %v291 = vld [vmem:[%s1 + $0x4] sm:$0xf]
        %v292 = vld [vmem:[%s1 + $0x8] sm:$0xf]
        %v293 = vld [vmem:[%s1 + $0xc] sm:$0xf]
        %v294 = vld [vmem:[%s2] sm:$0xff]
        %v295 = vld [vmem:[%s2 + $0x8] sm:$0xff]
        %v296 = vld [vmem:[%s2 + $0x10] sm:$0xff]
        %v297 = vld [vmem:[%s2 + $0x18] sm:$0xff]
        %v298 = vld [vmem:[%s4] sm:$0xff]
        %v299 = vld [vmem:[%s5] sm:$0xf]
        %v300 = vld [vmem:[%s5 + $0x4] sm:$0xf]
        %v301 = vld [vmem:[%s5 + $0x8] sm:$0xf]
        %v302 = vld [vmem:[%s6] sm:$0xff]
        %v303 = vlaneseq
        %v304 = vand.u32 %v303, 127
        %v305 = vld [vmem:[%s288] sm:$0x3]
        %307 = vset.pattern.permute.xlu0 0
        %308 = vperm.xlu0 %307, %v294
        %v309 = vpop.permute.xlu0 %308
        %312 = vset.pattern.permute.xlu0 0
        %313 = vperm.xlu0 %312, %v295
        %v314 = vpop.permute.xlu0 %313
        %317 = vset.pattern.permute.xlu0 0
        %318 = vperm.xlu0 %317, %v296
        %v319 = vpop.permute.xlu0 %318
        %322 = vset.pattern.permute.xlu0 0
        %323 = vperm.xlu0 %322, %v297
        %v324 = vpop.permute.xlu0 %323
        %v330 = vunpack.c.l.b16 %v290
        %v331 = vunpack.c.l.b16 %v291
        %v332 = vunpack.c.l.b16 %v292
        %v333 = vunpack.c.l.b16 %v293
        %v334 = vpack.c.b16 %v331, %v330
        %v335 = vpack.c.b16 %v333, %v332
        %vm336 = vcmask 31744
        %v338 = vsel %vm336, %v334, 0
        %v341 = vsel %vm336, %v335, 0
        %vm343 = vcmask 1041408
        %v345 = vsel %vm343, %v305, 0
        %347 = vmatprep.subr.bf16.mxu0 0
        %348 = vmatpush1.bf16.msra.mxu0 %v345
        %349 = vmatprep.subr.bf16.mxu0 0
        %350 = vmatpush1.bf16.msra.mxu0 0
        %351 = vmatprep.subr.bf16.mxu0 0
        %352 = vmatpush1.bf16.msra.mxu0 0
        %353 = vmatprep.subr.bf16.mxu0 0
        %354 = vmatpush1.bf16.msra.mxu0 0
        %355 = vmatprep.subr.bf16.mxu0 0
        %356 = vmatpush1.bf16.msra.mxu0 0
        %357 = vmatprep.subr.bf16.mxu0 0
        %358 = vmatpush1.bf16.msra.mxu0 0
        %359 = vmatprep.subr.bf16.mxu0 0
        %360 = vmatpush1.bf16.msra.mxu0 0
        %361 = vmatprep.subr.bf16.mxu0 0
        %362 = vmatpush1.bf16.msra.mxu0 0
        %363 = vmatprep.subr.bf16.mxu0 0
        %364 = vmatpush1.bf16.msra.mxu0 0
        %365 = vmatprep.subr.bf16.mxu0 0
        %366 = vmatpush1.bf16.msra.mxu0 0
        %367 = vmatprep.subr.bf16.mxu0 0
        %368 = vmatpush1.bf16.msra.mxu0 0
        %369 = vmatprep.subr.bf16.mxu0 0
        %370 = vmatpush1.bf16.msra.mxu0 0
        %371 = vmatprep.subr.bf16.mxu0 0
        %372 = vmatpush1.bf16.msra.mxu0 0
        %373 = vmatprep.subr.bf16.mxu0 0
        %374 = vmatpush1.bf16.msra.mxu0 0
        %375 = vmatprep.subr.bf16.mxu0 0
        %376 = vmatpush1.bf16.msra.mxu0 0
        %377 = vmatprep.subr.bf16.mxu0 0
        %378 = vmatpush1.bf16.msra.mxu0 0
        %379 = vmatprep.mubr.bf16.mxu0 0
        %380 = vmatmul.mubr.bf16.gmra.mrb[0].mxu0 %v338
        %v381 = vpop.f32.mrb[0].mxu0
        %v382 = vadd.f32 %v309, %v381
        %v383 = vpop.f32.mrb[0].mxu0
        %v384 = vpop.f32.mrb[0].mxu0
        %v385 = vadd.f32 %v314, %v384
        %v386 = vpop.f32.mrb[0].mxu0
        %387 = vmatprep.mubr.bf16.mxu0 0
        %388 = vmatmul.mubr.bf16.gmra.mrb[0].mxu0 %v341
        %v389 = vpop.f32.mrb[0].mxu0
        %v390 = vadd.f32 %v319, %v389
        %v391 = vpop.f32.mrb[0].mxu0
        %v392 = vpop.f32.mrb[0].mxu0
        %v393 = vadd.f32 %v324, %v392
        %v394 = vpop.f32.mrb[0].mxu0
        %395 = vdwg.mxu0
        %v396 = vpack.c.bf16 %v382, %v382
        %v397 = vld [vmem:[#allocation2] sm:$0xf]
        %v398 = vld [vmem:[#allocation2 + $0x4] sm:$0xf]
        %v399 = vld [vmem:[#allocation2 + $0x8] sm:$0xf]
        %v400 = vld [vmem:[#allocation2 + $0xc] sm:$0xf]
        %v401 = vld [vmem:[#allocation2 + $0x10] sm:$0xf]
        %v402 = vld [vmem:[#allocation2 + $0x14] sm:$0xf]
        %v403 = vld [vmem:[#allocation2 + $0x18] sm:$0xf]
        %v404 = vld [vmem:[#allocation2 + $0x1c] sm:$0xf]
        %v405 = vld [vmem:[#allocation2 + $0x20] sm:$0xf]
        %v406 = vld [vmem:[#allocation2 + $0x24] sm:$0xf]
        %v407 = vld [vmem:[#allocation2 + $0x28] sm:$0xf]
        %v408 = vld [vmem:[#allocation2 + $0x2c] sm:$0xf]
        %v409 = vld [vmem:[#allocation2 + $0x30] sm:$0xf]
        %v410 = vld [vmem:[#allocation2 + $0x34] sm:$0xf]
        %v411 = vld [vmem:[#allocation2 + $0x38] sm:$0xf]
        %v412 = vld [vmem:[#allocation2 + $0x3c] sm:$0xf]
        %414 = vset.pattern.permute.xlu0 0
        %415 = vperm.xlu0 %414, %v298
        %v416 = vpop.permute.xlu0 %415
        %v434 = vunpack.c.l.b16 %v397
        %v435 = vunpack.c.l.b16 %v398
        %v436 = vunpack.c.l.b16 %v399
        %v437 = vunpack.c.l.b16 %v400
        %v438 = vunpack.c.l.b16 %v401
        %v439 = vunpack.c.l.b16 %v402
        %v440 = vunpack.c.l.b16 %v403
        %v441 = vunpack.c.l.b16 %v404
        %v442 = vunpack.c.l.b16 %v405
        %v443 = vunpack.c.l.b16 %v406
        %v444 = vunpack.c.l.b16 %v407
        %v445 = vunpack.c.l.b16 %v408
        %v446 = vunpack.c.l.b16 %v409
        %v447 = vunpack.c.l.b16 %v410
        %v448 = vunpack.c.l.b16 %v411
        %v449 = vunpack.c.l.b16 %v412
        %v450 = vpack.c.b16 %v435, %v434
        %v451 = vpack.c.b16 %v437, %v436
        %v452 = vpack.c.b16 %v439, %v438
        %v453 = vpack.c.b16 %v441, %v440
        %v454 = vpack.c.b16 %v443, %v442
        %v455 = vpack.c.b16 %v445, %v444
        %v456 = vpack.c.b16 %v447, %v446
        %v457 = vpack.c.b16 %v449, %v448
        %466 = vmatprep.subr.bf16.mxu0 0
        %467 = vmatpush1.bf16.msra.mxu0 %v450
        %468 = vmatprep.subr.bf16.mxu0 0
        %469 = vmatpush1.bf16.msra.mxu0 %v451
        %470 = vmatprep.subr.bf16.mxu0 0
        %471 = vmatpush1.bf16.msra.mxu0 %v452
        %472 = vmatprep.subr.bf16.mxu0 0
        %473 = vmatpush1.bf16.msra.mxu0 %v453
        %474 = vmatprep.subr.bf16.mxu0 0
        %475 = vmatpush1.bf16.msra.mxu0 %v454
        %476 = vmatprep.subr.bf16.mxu0 0
        %477 = vmatpush1.bf16.msra.mxu0 %v455
        %478 = vmatprep.subr.bf16.mxu0 0
        %479 = vmatpush1.bf16.msra.mxu0 %v456
        %480 = vmatprep.subr.bf16.mxu0 0
        %481 = vmatpush1.bf16.msra.mxu0 %v457
        %482 = vmatprep.subr.bf16.mxu0 0
        %483 = vmatpush1.bf16.msra.mxu0 0
        %484 = vmatprep.subr.bf16.mxu0 0
        %485 = vmatpush1.bf16.msra.mxu0 0
        %486 = vmatprep.subr.bf16.mxu0 0
        %487 = vmatpush1.bf16.msra.mxu0 0
        %488 = vmatprep.subr.bf16.mxu0 0
        %489 = vmatpush1.bf16.msra.mxu0 0
        %490 = vmatprep.subr.bf16.mxu0 0
        %491 = vmatpush1.bf16.msra.mxu0 0
        %492 = vmatprep.subr.bf16.mxu0 0
        %493 = vmatpush1.bf16.msra.mxu0 0
        %494 = vmatprep.subr.bf16.mxu0 0
        %495 = vmatpush1.bf16.msra.mxu0 0
        %496 = vmatprep.subr.bf16.mxu0 0
        %497 = vmatpush1.bf16.msra.mxu0 0
        %498 = vmatprep.mubr.bf16.mxu0 0
        %499 = vmatmul.mubr.bf16.gmra.mrb[0].mxu0 %v396
        %v500 = vpop.f32.mrb[0].mxu0
        %v501 = vadd.f32 %v416, %v500
        %v502 = vpop.f32.mrb[0].mxu0
        %v503 = vpop.f32.mrb[0].mxu0
        %v504 = vpop.f32.mrb[0].mxu0
        %505 = vdwg.mxu0
        %v506 = vpack.c.bf16 %v385, %v385
        %s507 = scalar_lea.vmem [#allocation2], 64
        %v508 = vld [vmem:[%s507] sm:$0xf]
        %v509 = vld [vmem:[%s507 + $0x4] sm:$0xf]
        %v510 = vld [vmem:[%s507 + $0x8] sm:$0xf]
        %v511 = vld [vmem:[%s507 + $0xc] sm:$0xf]
        %v512 = vld [vmem:[%s507 + $0x10] sm:$0xf]
        %v513 = vld [vmem:[%s507 + $0x14] sm:$0xf]
        %v514 = vld [vmem:[%s507 + $0x18] sm:$0xf]
        %v515 = vld [vmem:[%s507 + $0x1c] sm:$0xf]
        %v516 = vld [vmem:[%s507 + $0x20] sm:$0xf]
        %v517 = vld [vmem:[%s507 + $0x24] sm:$0xf]
        %v518 = vld [vmem:[%s507 + $0x28] sm:$0xf]
        %v519 = vld [vmem:[%s507 + $0x2c] sm:$0xf]
        %v520 = vld [vmem:[%s507 + $0x30] sm:$0xf]
        %v521 = vld [vmem:[%s507 + $0x34] sm:$0xf]
        %v522 = vld [vmem:[%s507 + $0x38] sm:$0xf]
        %v523 = vld [vmem:[%s507 + $0x3c] sm:$0xf]
        %v540 = vunpack.c.l.b16 %v508
        %v541 = vunpack.c.l.b16 %v509
        %v542 = vunpack.c.l.b16 %v510
        %v543 = vunpack.c.l.b16 %v511
        %v544 = vunpack.c.l.b16 %v512
        %v545 = vunpack.c.l.b16 %v513
        %v546 = vunpack.c.l.b16 %v514
        %v547 = vunpack.c.l.b16 %v515
        %v548 = vunpack.c.l.b16 %v516
        %v549 = vunpack.c.l.b16 %v517
        %v550 = vunpack.c.l.b16 %v518
        %v551 = vunpack.c.l.b16 %v519
        %v552 = vunpack.c.l.b16 %v520
        %v553 = vunpack.c.l.b16 %v521
        %v554 = vunpack.c.l.b16 %v522
        %v555 = vunpack.c.l.b16 %v523
        %v556 = vpack.c.b16 %v541, %v540
        %v557 = vpack.c.b16 %v543, %v542
        %v558 = vpack.c.b16 %v545, %v544
        %v559 = vpack.c.b16 %v547, %v546
        %v560 = vpack.c.b16 %v549, %v548
        %v561 = vpack.c.b16 %v551, %v550
        %v562 = vpack.c.b16 %v553, %v552
        %v563 = vpack.c.b16 %v555, %v554
        %572 = vmatprep.subr.bf16.mxu0 0
        %573 = vmatpush1.bf16.msra.mxu0 %v556
        %574 = vmatprep.subr.bf16.mxu0 0
        %575 = vmatpush1.bf16.msra.mxu0 %v557
        %576 = vmatprep.subr.bf16.mxu0 0
        %577 = vmatpush1.bf16.msra.mxu0 %v558
        %578 = vmatprep.subr.bf16.mxu0 0
        %579 = vmatpush1.bf16.msra.mxu0 %v559
        %580 = vmatprep.subr.bf16.mxu0 0
        %581 = vmatpush1.bf16.msra.mxu0 %v560
        %582 = vmatprep.subr.bf16.mxu0 0
        %583 = vmatpush1.bf16.msra.mxu0 %v561
        %584 = vmatprep.subr.bf16.mxu0 0
        %585 = vmatpush1.bf16.msra.mxu0 %v562
        %586 = vmatprep.subr.bf16.mxu0 0
        %587 = vmatpush1.bf16.msra.mxu0 %v563
        %588 = vmatprep.subr.bf16.mxu0 0
        %589 = vmatpush1.bf16.msra.mxu0 0
        %590 = vmatprep.subr.bf16.mxu0 0
        %591 = vmatpush1.bf16.msra.mxu0 0
        %592 = vmatprep.subr.bf16.mxu0 0
        %593 = vmatpush1.bf16.msra.mxu0 0
        %594 = vmatprep.subr.bf16.mxu0 0
        %595 = vmatpush1.bf16.msra.mxu0 0
        %596 = vmatprep.subr.bf16.mxu0 0
        %597 = vmatpush1.bf16.msra.mxu0 0
        %598 = vmatprep.subr.bf16.mxu0 0
        %599 = vmatpush1.bf16.msra.mxu0 0
        %600 = vmatprep.subr.bf16.mxu0 0
        %601 = vmatpush1.bf16.msra.mxu0 0
        %602 = vmatprep.subr.bf16.mxu0 0
        %603 = vmatpush1.bf16.msra.mxu0 0
        %604 = vmatprep.mubr.bf16.mxu0 0
        %605 = vmatmul.mubr.bf16.gmra.mrb[0].mxu0 %v506
        %v606 = vpop.f32.mrb[0].mxu0
        %v607 = vadd.f32 0.0, %v606
        %v608 = vpop.f32.mrb[0].mxu0
        %v609 = vpop.f32.mrb[0].mxu0
        %v610 = vpop.f32.mrb[0].mxu0
        %611 = vdwg.mxu0
        %v612 = vadd.f32 %v501, %v607
        %v613 = vpack.c.bf16 %v390, %v390
        %s614 = scalar_lea.vmem [#allocation2], 128
        %v615 = vld [vmem:[%s614] sm:$0xf]
        %v616 = vld [vmem:[%s614 + $0x4] sm:$0xf]
        %v617 = vld [vmem:[%s614 + $0x8] sm:$0xf]
        %v618 = vld [vmem:[%s614 + $0xc] sm:$0xf]
        %v619 = vld [vmem:[%s614 + $0x10] sm:$0xf]
        %v620 = vld [vmem:[%s614 + $0x14] sm:$0xf]
        %v621 = vld [vmem:[%s614 + $0x18] sm:$0xf]
        %v622 = vld [vmem:[%s614 + $0x1c] sm:$0xf]
        %v623 = vld [vmem:[%s614 + $0x20] sm:$0xf]
        %v624 = vld [vmem:[%s614 + $0x24] sm:$0xf]
        %v625 = vld [vmem:[%s614 + $0x28] sm:$0xf]
        %v626 = vld [vmem:[%s614 + $0x2c] sm:$0xf]
        %v627 = vld [vmem:[%s614 + $0x30] sm:$0xf]
        %v628 = vld [vmem:[%s614 + $0x34] sm:$0xf]
        %v629 = vld [vmem:[%s614 + $0x38] sm:$0xf]
        %v630 = vld [vmem:[%s614 + $0x3c] sm:$0xf]
        %v647 = vunpack.c.l.b16 %v615
        %v648 = vunpack.c.l.b16 %v616
        %v649 = vunpack.c.l.b16 %v617
        %v650 = vunpack.c.l.b16 %v618
        %v651 = vunpack.c.l.b16 %v619
        %v652 = vunpack.c.l.b16 %v620
        %v653 = vunpack.c.l.b16 %v621
        %v654 = vunpack.c.l.b16 %v622
        %v655 = vunpack.c.l.b16 %v623
        %v656 = vunpack.c.l.b16 %v624
        %v657 = vunpack.c.l.b16 %v625
        %v658 = vunpack.c.l.b16 %v626
        %v659 = vunpack.c.l.b16 %v627
        %v660 = vunpack.c.l.b16 %v628
        %v661 = vunpack.c.l.b16 %v629
        %v662 = vunpack.c.l.b16 %v630
        %v663 = vpack.c.b16 %v648, %v647
        %v664 = vpack.c.b16 %v650, %v649
        %v665 = vpack.c.b16 %v652, %v651
        %v666 = vpack.c.b16 %v654, %v653
        %v667 = vpack.c.b16 %v656, %v655
        %v668 = vpack.c.b16 %v658, %v657
        %v669 = vpack.c.b16 %v660, %v659
        %v670 = vpack.c.b16 %v662, %v661
        %679 = vmatprep.subr.bf16.mxu0 0
        %680 = vmatpush1.bf16.msra.mxu0 %v663
        %681 = vmatprep.subr.bf16.mxu0 0
        %682 = vmatpush1.bf16.msra.mxu0 %v664
        %683 = vmatprep.subr.bf16.mxu0 0
        %684 = vmatpush1.bf16.msra.mxu0 %v665
        %685 = vmatprep.subr.bf16.mxu0 0
        %686 = vmatpush1.bf16.msra.mxu0 %v666
        %687 = vmatprep.subr.bf16.mxu0 0
        %688 = vmatpush1.bf16.msra.mxu0 %v667
        %689 = vmatprep.subr.bf16.mxu0 0
        %690 = vmatpush1.bf16.msra.mxu0 %v668
        %691 = vmatprep.subr.bf16.mxu0 0
        %692 = vmatpush1.bf16.msra.mxu0 %v669
        %693 = vmatprep.subr.bf16.mxu0 0
        %694 = vmatpush1.bf16.msra.mxu0 %v670
        %695 = vmatprep.subr.bf16.mxu0 0
        %696 = vmatpush1.bf16.msra.mxu0 0
        %697 = vmatprep.subr.bf16.mxu0 0
        %698 = vmatpush1.bf16.msra.mxu0 0
        %699 = vmatprep.subr.bf16.mxu0 0
        %700 = vmatpush1.bf16.msra.mxu0 0
        %701 = vmatprep.subr.bf16.mxu0 0
        %702 = vmatpush1.bf16.msra.mxu0 0
        %703 = vmatprep.subr.bf16.mxu0 0
        %704 = vmatpush1.bf16.msra.mxu0 0
        %705 = vmatprep.subr.bf16.mxu0 0
        %706 = vmatpush1.bf16.msra.mxu0 0
        %707 = vmatprep.subr.bf16.mxu0 0
        %708 = vmatpush1.bf16.msra.mxu0 0
        %709 = vmatprep.subr.bf16.mxu0 0
        %710 = vmatpush1.bf16.msra.mxu0 0
        %711 = vmatprep.mubr.bf16.mxu0 0
        %712 = vmatmul.mubr.bf16.gmra.mrb[0].mxu0 %v613
        %v713 = vpop.f32.mrb[0].mxu0
        %v714 = vadd.f32 0.0, %v713
        %v715 = vpop.f32.mrb[0].mxu0
        %v716 = vpop.f32.mrb[0].mxu0
        %v717 = vpop.f32.mrb[0].mxu0
        %718 = vdwg.mxu0
        %v719 = vadd.f32 %v612, %v714
        %v720 = vmax.f32 %v719, 0.0
        %v721 = vpack.c.bf16 %v720, %v720
        %v725 = vunpack.c.l.b16 %v299
        %v726 = vunpack.c.l.b16 %v300
        %v727 = vunpack.c.l.b16 %v301
        %v728 = vpack.c.b16 %v726, %v725
        %v729 = vpack.c.b16 %v727, %v727
        %vm730 = vcmask 64512
        %v732 = vsel %vm730, %v728, 0
        %v735 = vsel %vm730, %v729, 0
        %vm737 = vcmask 1043456
        %v739 = vsel %vm737, %v721, 0
        %741 = vmatprep.subr.bf16.mxu0 0
        %742 = vmatpush1.bf16.msra.mxu0 %v739
        %743 = vmatprep.subr.bf16.mxu0 0
        %744 = vmatpush1.bf16.msra.mxu0 0
        %745 = vmatprep.subr.bf16.mxu0 0
        %746 = vmatpush1.bf16.msra.mxu0 0
        %747 = vmatprep.subr.bf16.mxu0 0
        %748 = vmatpush1.bf16.msra.mxu0 0
        %749 = vmatprep.subr.bf16.mxu0 0
        %750 = vmatpush1.bf16.msra.mxu0 0
        %751 = vmatprep.subr.bf16.mxu0 0
        %752 = vmatpush1.bf16.msra.mxu0 0
        %753 = vmatprep.subr.bf16.mxu0 0
        %754 = vmatpush1.bf16.msra.mxu0 0
        %755 = vmatprep.subr.bf16.mxu0 0
        %756 = vmatpush1.bf16.msra.mxu0 0
        %757 = vmatprep.subr.bf16.mxu0 0
        %758 = vmatpush1.bf16.msra.mxu0 0
        %759 = vmatprep.subr.bf16.mxu0 0
        %760 = vmatpush1.bf16.msra.mxu0 0
        %761 = vmatprep.subr.bf16.mxu0 0
        %762 = vmatpush1.bf16.msra.mxu0 0
        %763 = vmatprep.subr.bf16.mxu0 0
        %764 = vmatpush1.bf16.msra.mxu0 0
        %765 = vmatprep.subr.bf16.mxu0 0
        %766 = vmatpush1.bf16.msra.mxu0 0
        %767 = vmatprep.subr.bf16.mxu0 0
        %768 = vmatpush1.bf16.msra.mxu0 0
        %769 = vmatprep.subr.bf16.mxu0 0
        %770 = vmatpush1.bf16.msra.mxu0 0
        %771 = vmatprep.subr.bf16.mxu0 0
        %772 = vmatpush1.bf16.msra.mxu0 0
        %773 = vmatprep.mubr.bf16.mxu0 0
        %774 = vmatmul.mubr.bf16.gmra.mrb[0].mxu0 %v732
        %v775 = vpop.f32.mrb[0].mxu0
        %v776 = vadd.f32 0.0, %v775
        %v777 = vpop.f32.mrb[0].mxu0
        %v778 = vpop.f32.mrb[0].mxu0
        %v779 = vadd.f32 0.0, %v778
        %v780 = vpop.f32.mrb[0].mxu0
        %781 = vmatprep.mubr.bf16.mxu0 0
        %782 = vmatmul.mubr.bf16.gmra.mrb[0].mxu0 %v735
        %v783 = vpop.f32.mrb[0].mxu0
        %v784 = vadd.f32 0.0, %v783
        %v785 = vpop.f32.mrb[0].mxu0
        %v786 = vpop.f32.mrb[0].mxu0
        %v787 = vpop.f32.mrb[0].mxu0
        %788 = vdwg.mxu0
        %790 = vset.pattern.permute.xlu0 0
        %791 = vperm.xlu0 %790, %v302
        %v792 = vpop.permute.xlu0 %791
        %v794 = vadd.f32 %v792, %v393
        %v795 = vadd.f32 %v794, %v779
        %796 = vrot.lane.b32.xlu0 %v776, 16
        %v797 = vpop.permute.xlu0 %796
        %vm798 = vcmp.ge.s32.totalorder %v304, 16
        %v799 = vsel %vm798, 1, 0
        %vm800 = vcmp.eq.s32.totalorder %v799, 1
        %v801 = vsel %vm800, %v797, 0.0
        %v802 = vadd.f32 %v795, %v801
        %803 = vrot.lane.b32.xlu0 %v784, 112
        %v804 = vpop.permute.xlu0 %803
        %vm805 = vcmp.lt.s32.totalorder %v304, 112
        %v806 = vsel %vm805, 1, 0
        %vm807 = vcmp.eq.s32.totalorder %v806, 1
        %v808 = vsel %vm807, %v804, 0.0
        %v809 = vadd.f32 %v802, %v808
        %v810 = vmax.f32 %v809, 0.0
        %811 = vst [vmem:[%s284] sm:$0xff] %v810
        %s812 = sand.u32 %s182, 1
        %s813 = scalar_lea.sflag [#allocation4], %s812
        %s814 = sand.u32 %s182, 1
        %s815 = smul.addr %s814, 8
        %s816 = scalar_lea.vmem [#allocation5], %s815
        // Predicated region
        $region53: #{tpu_custom_call.1} parent=47 // pred_check
          %p817 = pneg %p192
        $region54: #{tpu_custom_call.1} parent=47 // pred_check_branch
          %819 = sbr.rel (%p817) target = $region56
        $region55: #{tpu_custom_call.1} parent=47 // pred_region
          %s821 = ssub.s32 128, 128
          %822 = vsyncadd %s813, %s821
          %s823 = smul.addr %s22, 128
          %s824 = scalar_lea.hbm %s7, %s823
          %s826 = sshll.u32 %s816, 4
          %s827 = int_to_ptr.vmem [resolvable:$true] %s826
          %829 = dma.vmem_to_hbm [thread:$0]  %s827, 128, %s824, %s813
        $region56: #{tpu_custom_call.1} parent=47 // pred_fallthru
          _
      $region48: #{tpu_custom_call.1} parent=5 // pred_fallthru
        _
      %p830 = scmp.le.s32.totalorder 2, %s17
      // Predicated region
      $region57: #{tpu_custom_call.1} parent=5 // pred_check
        %p831 = pneg %p830
      $region58: #{tpu_custom_call.1} parent=5 // pred_check_branch
        %833 = sbr.rel (%p831) target = $region60
      $region59: #{tpu_custom_call.1} parent=5 // pred_region
        %s834 = ssub.s32 %s17, 2
        // Predicated region
        $region61: #{tpu_custom_call.1} parent=59 // pred_check
          %p835 = pneg %p198
        $region62: #{tpu_custom_call.1} parent=59 // pred_check_branch
          %837 = sbr.rel (%p835) target = $region64
        $region63: #{tpu_custom_call.1} parent=59 // pred_region
          %s838 = sand.u32 %s183, 1
          %s839 = scalar_lea.sflag [#allocation4], %s838
          %s840 = sand.u32 %s183, 1
          %s841 = smul.addr %s840, 8
          %s842 = scalar_lea.vmem [#allocation5], %s841
          %843 = dma.done %s839, 128
        $region64: #{tpu_custom_call.1} parent=59 // pred_fallthru
          _
      $region60: #{tpu_custom_call.1} parent=5 // pred_fallthru
        _
    $region6: #{tpu_custom_call.1} parent=1 // loop_footer
      %s21 = sadd.s32 1, %s17
    $region7: #{tpu_custom_call.1} parent=1 // loop_footer_branch
      %16 = sbr.rel target = $region3
    $region8: #{tpu_custom_call.1} parent=1 // loop_exit
      _
    %844 = vsyncpa [#allocation3], 1
    %s845 = scalar_lea.sflag [#allocation3], 1
    %846 = vsyncpa %s845, 1
    %847 = vsyncpa [#allocation4], 1
    %s848 = scalar_lea.sflag [#allocation4], 1
    %849 = vsyncpa %s848, 1

</llo_original>
